<compile_context>
chip_gen: v6e
topology: v6e:2x2x1
jax: 0.10.0
libtpu: 0.0.40
codegen_flags: <defaults>
</compile_context>

<pallas_src>
import jax
import jax.numpy as jnp
from jax.experimental import pallas as pl
from jax.experimental.pallas import tpu as pltpu  # noqa: F401  (TPU backend)


def _sslwm_encoder_kernel(x_ref, adj_ref, pool_ref,
                          w1b_ref, b1b_ref, w2_ref, b2b_ref,
                          z_ref, g_ref):
    """Both augmentation views fused, lane-stacked, in one invocation.

    x_ref    : (N, F)    bf16 node features
    adj_ref  : (N, N)    bf16 symmetric-normalized adjacency A_hat
    pool_ref : (Bp, N)   bf16 one-hot graph-membership matrix (padded rows)
    w1b_ref  : (F, 2H)   bf16 [W1 | diag(mask) @ W1]  (views lane-stacked)
    b1b_ref  : (1, 2H)   f32  [b1 | b1]
    w2_ref   : (H, H)    bf16
    b2b_ref  : (1, 2H)   f32  [b2 | b2]
    z_ref    : (N, 2H)   f32  cols [0,H) = view-1 node embeds, [H,2H) = view-2
    g_ref    : (Bp, 2H)  f32  cols [0,H) = view-1 graph embeds, [H,2H) = view-2
    """
    x = x_ref[...]
    adj = adj_ref[...]
    pool = pool_ref[...]
    w1b = w1b_ref[...]
    b1b = b1b_ref[...]
    w2 = w2_ref[...]
    b2b = b2b_ref[...]

    h_dim = w2.shape[0]

    # ---- GCN layer 1: shared propagation, lane-stacked weight matmul -------
    # adj @ x is computed once; the feature mask of view 2 lives inside w1b.
    ax = jnp.dot(adj, x, preferred_element_type=jnp.float32)          # (N, F)
    h_both = jnp.maximum(
        jnp.dot(ax.astype(jnp.bfloat16), w1b,
                preferred_element_type=jnp.float32) + b1b,
        0.0)                                                          # (N, 2H)
    h_bf = h_both.astype(jnp.bfloat16)

    # ---- GCN layer 2: two weight matmuls (same W2), ONE adj propagation ----
    hw1 = jnp.dot(h_bf[:, :h_dim], w2, preferred_element_type=jnp.float32)
    hw2 = jnp.dot(h_bf[:, h_dim:], w2, preferred_element_type=jnp.float32)
    hw_both = jnp.concatenate([hw1, hw2], axis=1).astype(jnp.bfloat16)  # (N,2H)
    z_lane = jnp.maximum(
        jnp.dot(adj, hw_both, preferred_element_type=jnp.float32) + b2b,
        0.0)                                                          # (N, 2H)

    # ---- lane-dense outputs -------------------------------------------------
    z_ref[...] = z_lane.astype(z_ref.dtype)                           # (N, 2H)

    # global add pool for both views in one MXU pass: (Bp,N) @ (N,2H)
    g_ref[...] = jnp.dot(pool, z_lane.astype(jnp.bfloat16),
                         preferred_element_type=jnp.float32
                         ).astype(g_ref.dtype)                        # (Bp, 2H)


def encoder_forward(x, edge_index, batch, params, *, num_graphs):
    """Pallas implementation of Encoder.forward.

    x          : (N, F) float32 node features
    edge_index : (2, E) int32 COO edges (provide both directions if undirected)
    batch      : (N,)   int32 graph id per node
    returns (z1, z2, g1, g2) with shapes (N,H), (N,H), (B,H), (B,H)
    """
    N, F = x.shape
    H = params["w1"].shape[1]
    B = num_graphs
    Bp = ((B + 7) // 8) * 8   # pad pooled rows to a full sublane group

    # ---- glue (plain JAX): dense normalized adjacency ----------------------
    # TODO(synk): cache this across forward calls for static graphs / go
    #             sparse at real sizes -- the O(N^2) build dominates there.
    src, dst = edge_index[0], edge_index[1]
    adj = jnp.zeros((N, N), jnp.float32).at[src, dst].set(1.0)
    adj = jnp.maximum(adj, jnp.eye(N, dtype=jnp.float32))   # self loops, no 2s
    deg = jnp.sum(adj, axis=1)
    d_inv_sqrt = jax.lax.rsqrt(jnp.maximum(deg, 1e-12))
    adj_hat = (adj * d_inv_sqrt[:, None] * d_inv_sqrt[None, :]).astype(jnp.bfloat16)

    # ---- glue (plain JAX): pooling matrix (padded to Bp rows) --------------
    pool = (batch[None, :] == jnp.arange(Bp)[:, None]).astype(jnp.bfloat16)

    # ---- glue (plain JAX): fold the deterministic aug2 column mask into W1 -
    # aug1 = identity, aug2 = keep even feature columns.
    feat_mask = (jnp.arange(F) % 2 == 0).astype(jnp.float32)          # (F,)
    w1 = params["w1"]
    w1_both = jnp.concatenate([w1, w1 * feat_mask[:, None]], axis=1)  # (F, 2H)
    b1_both = jnp.concatenate([params["b1"], params["b1"]], axis=1)   # (1, 2H)
    b2_both = jnp.concatenate([params["b2"], params["b2"]], axis=1)   # (1, 2H)

    # Single fused invocation: no grid -> whole arrays resident in VMEM, no
    # per-step pipeline overhead and no double-buffered copies of constants.
    z_both, g_both = pl.pallas_call(
        _sslwm_encoder_kernel,
        out_shape=(
            jax.ShapeDtypeStruct((N, 2 * H), jnp.float32),    # z: views on lanes
            jax.ShapeDtypeStruct((Bp, 2 * H), jnp.float32),   # g: views on lanes
        ),
    )(x.astype(jnp.bfloat16), adj_hat, pool,
      w1_both.astype(jnp.bfloat16), b1_both,
      params["w2"].astype(jnp.bfloat16), b2_both)

    z1, z2 = z_both[:, :H], z_both[:, H:]
    g1, g2 = g_both[:B, :H], g_both[:B, H:]
    return z1, z2, g1, g2


def _init_params(key, F, H):
    k1, k2 = jax.random.split(key)
    scale1 = 1.0 / jnp.sqrt(F)
    scale2 = 1.0 / jnp.sqrt(H)
    return {
        "w1": jax.random.normal(k1, (F, H), jnp.float32) * scale1,
        "b1": jnp.zeros((1, H), jnp.float32),
        "w2": jax.random.normal(k2, (H, H), jnp.float32) * scale2,
        "b2": jnp.zeros((1, H), jnp.float32),
    }


if __name__ == "__main__":
    key = jax.random.PRNGKey(0)
    kx, kp = jax.random.split(key, 2)

    # nodes (fills the MXU M dim), feature dim, hidden (multiple of 128 ->
    # lane-dense outputs), graphs (multiple of 8 -> unmasked pooled store)
    N, F, H, B = 256, 16, 128, 8

    x = jax.random.normal(kx, (N, F), jnp.float32)

    # B ring graphs of N//B nodes each, with BOTH edge directions supplied
    per = N // B
    ring_src = jnp.arange(per)
    ring_dst = (ring_src + 1) % per
    offs = (jnp.arange(B) * per)[:, None]                      # (B, 1)
    src_fwd = (ring_src[None, :] + offs).reshape(-1)
    dst_fwd = (ring_dst[None, :] + offs).reshape(-1)
    src = jnp.concatenate([src_fwd, dst_fwd])
    dst = jnp.concatenate([dst_fwd, src_fwd])
    edge_index = jnp.stack([src, dst]).astype(jnp.int32)        # (2, 2*N)
    batch = jnp.repeat(jnp.arange(B, dtype=jnp.int32), per)     # (N,)

    params = _init_params(kp, F, H)

    z1, z2, g1, g2 = jax.jit(
        lambda x_, ei_, b_: encoder_forward(x_, ei_, b_, params, num_graphs=B)
    )(x, edge_index, batch)
    jax.block_until_ready((z1, z2, g1, g2))

    assert z1.shape == (N, H) and z2.shape == (N, H)
    assert g1.shape == (B, H) and g2.shape == (B, H)
    assert bool(jnp.all(jnp.isfinite(z1)) & jnp.all(jnp.isfinite(z2))
                & jnp.all(jnp.isfinite(g1)) & jnp.all(jnp.isfinite(g2)))
    print("KERNEL_OK")
</pallas_src>

<mosaic_0001>
module attributes {stable_mosaic.version = 11 : i64} {
  func.func @_sslwm_encoder_kernel(%arg0: memref<256x16xbf16, #tpu.memory_space<vmem>>, %arg1: memref<256x256xbf16, #tpu.memory_space<vmem>>, %arg2: memref<8x256xbf16, #tpu.memory_space<vmem>>, %arg3: memref<16x256xbf16, #tpu.memory_space<vmem>>, %arg4: memref<1x256xf32, #tpu.memory_space<vmem>>, %arg5: memref<128x128xbf16, #tpu.memory_space<vmem>>, %arg6: memref<1x256xf32, #tpu.memory_space<vmem>>, %arg7: memref<256x256xf32, #tpu.memory_space<vmem>>, %arg8: memref<8x256xf32, #tpu.memory_space<vmem>>) attributes {dimension_semantics = [], scalar_prefetch = 0 : i64, scratch_operands = 0 : i64, tpu.core_type = #tpu.core_type<tc>} {
    %c0 = arith.constant 0 : index
    %c0_0 = arith.constant 0 : index
    %0 = vector.load %arg0[%c0, %c0_0] : memref<256x16xbf16, #tpu.memory_space<vmem>>, vector<256x16xbf16>
    %c0_1 = arith.constant 0 : index
    %c0_2 = arith.constant 0 : index
    %1 = vector.load %arg1[%c0_1, %c0_2] : memref<256x256xbf16, #tpu.memory_space<vmem>>, vector<256x256xbf16>
    %c0_3 = arith.constant 0 : index
    %c0_4 = arith.constant 0 : index
    %2 = vector.load %arg2[%c0_3, %c0_4] : memref<8x256xbf16, #tpu.memory_space<vmem>>, vector<8x256xbf16>
    %c0_5 = arith.constant 0 : index
    %c0_6 = arith.constant 0 : index
    %3 = vector.load %arg3[%c0_5, %c0_6] : memref<16x256xbf16, #tpu.memory_space<vmem>>, vector<16x256xbf16>
    %c0_7 = arith.constant 0 : index
    %c0_8 = arith.constant 0 : index
    %4 = vector.load %arg4[%c0_7, %c0_8] : memref<1x256xf32, #tpu.memory_space<vmem>>, vector<1x256xf32>
    %c0_9 = arith.constant 0 : index
    %c0_10 = arith.constant 0 : index
    %5 = vector.load %arg5[%c0_9, %c0_10] : memref<128x128xbf16, #tpu.memory_space<vmem>>, vector<128x128xbf16>
    %c0_11 = arith.constant 0 : index
    %c0_12 = arith.constant 0 : index
    %6 = vector.load %arg6[%c0_11, %c0_12] : memref<1x256xf32, #tpu.memory_space<vmem>>, vector<1x256xf32>
    %cst = arith.constant dense<0.000000e+00> : vector<256x16xf32>
    %7 = tpu.matmul %1, %0, %cst {dimension_numbers = #tpu.dot_dimension_numbers<[1], [0], [0], [1], [0, 0, 1, 1], [], []>} : vector<256x256xbf16>, vector<256x16xbf16>, vector<256x16xf32> -> vector<256x16xf32>
    %8 = arith.truncf %7 : vector<256x16xf32> to vector<256x16xbf16>
    %cst_13 = arith.constant dense<0.000000e+00> : vector<256x256xf32>
    %9 = tpu.matmul %8, %3, %cst_13 {dimension_numbers = #tpu.dot_dimension_numbers<[1], [0], [0], [1], [0, 0, 1, 1], [], []>} : vector<256x16xbf16>, vector<16x256xbf16>, vector<256x256xf32> -> vector<256x256xf32>
    %10 = vector.broadcast %4 : vector<1x256xf32> to vector<256x256xf32>
    %11 = arith.addf %9, %10 : vector<256x256xf32>
    %cst_14 = arith.constant 0.000000e+00 : f32
    %12 = vector.broadcast %cst_14 : f32 to vector<256x256xf32>
    %13 = arith.maximumf %11, %12 : vector<256x256xf32>
    %14 = arith.truncf %13 : vector<256x256xf32> to vector<256x256xbf16>
    %15 = vector.extract_strided_slice %14 {offsets = [0, 0], sizes = [256, 128], strides = [1, 1]} : vector<256x256xbf16> to vector<256x128xbf16>
    %cst_15 = arith.constant dense<0.000000e+00> : vector<256x128xf32>
    %16 = tpu.matmul %15, %5, %cst_15 {dimension_numbers = #tpu.dot_dimension_numbers<[1], [0], [0], [1], [0, 0, 1, 1], [], []>} : vector<256x128xbf16>, vector<128x128xbf16>, vector<256x128xf32> -> vector<256x128xf32>
    %17 = vector.extract_strided_slice %14 {offsets = [0, 128], sizes = [256, 128], strides = [1, 1]} : vector<256x256xbf16> to vector<256x128xbf16>
    %cst_16 = arith.constant dense<0.000000e+00> : vector<256x128xf32>
    %18 = tpu.matmul %17, %5, %cst_16 {dimension_numbers = #tpu.dot_dimension_numbers<[1], [0], [0], [1], [0, 0, 1, 1], [], []>} : vector<256x128xbf16>, vector<128x128xbf16>, vector<256x128xf32> -> vector<256x128xf32>
    %19 = tpu.concatenate %16, %18 in 1 : vector<256x128xf32>, vector<256x128xf32> -> vector<256x256xf32>
    %20 = arith.truncf %19 : vector<256x256xf32> to vector<256x256xbf16>
    %cst_17 = arith.constant dense<0.000000e+00> : vector<256x256xf32>
    %21 = tpu.matmul %1, %20, %cst_17 {dimension_numbers = #tpu.dot_dimension_numbers<[1], [0], [0], [1], [0, 0, 1, 1], [], []>} : vector<256x256xbf16>, vector<256x256xbf16>, vector<256x256xf32> -> vector<256x256xf32>
    %22 = vector.broadcast %6 : vector<1x256xf32> to vector<256x256xf32>
    %23 = arith.addf %21, %22 : vector<256x256xf32>
    %cst_18 = arith.constant 0.000000e+00 : f32
    %24 = vector.broadcast %cst_18 : f32 to vector<256x256xf32>
    %25 = arith.maximumf %23, %24 : vector<256x256xf32>
    %c0_19 = arith.constant 0 : index
    %c0_20 = arith.constant 0 : index
    %26 = vector.load %arg7[%c0_19, %c0_20] : memref<256x256xf32, #tpu.memory_space<vmem>>, vector<256x256xf32>
    tpu.vector_store %arg7[%c0_19, %c0_20], %25 {strides = array<i32>} : memref<256x256xf32, #tpu.memory_space<vmem>>, vector<256x256xf32>,
    %27 = arith.truncf %25 : vector<256x256xf32> to vector<256x256xbf16>
    %cst_21 = arith.constant dense<0.000000e+00> : vector<8x256xf32>
    %28 = tpu.matmul %2, %27, %cst_21 {dimension_numbers = #tpu.dot_dimension_numbers<[1], [0], [0], [1], [0, 0, 1, 1], [], []>} : vector<8x256xbf16>, vector<256x256xbf16>, vector<8x256xf32> -> vector<8x256xf32>
    %c0_22 = arith.constant 0 : index
    %c0_23 = arith.constant 0 : index
    %29 = vector.load %arg8[%c0_22, %c0_23] : memref<8x256xf32, #tpu.memory_space<vmem>>, vector<8x256xf32>
    tpu.vector_store %arg8[%c0_22, %c0_23], %28 {strides = array<i32>} : memref<8x256xf32, #tpu.memory_space<vmem>>, vector<8x256xf32>,
    return
  }
}

</mosaic_0001>

<llo_original>
// kernel: _lambda_.1
$region0: #{_lambda_.1}
  #allocation0 [shape = 'u32[]', space=smem, size = 0x4, offset = 0x4, fixed_abs, tag = 'smem constant byte address 0x4 - core index']
  #allocation1 [shape = 'u32[144,128]{1,0:T(1,128)}', space=vmem, size = 0x12000, scoped, tag = 'internal scratch']
  %s0 = inlined_call_operand.vmem [shape: bf16[256,16], index: 0, kind: input, shape index: {}]
  %s1 = inlined_call_operand.vmem [shape: bf16[256,256], index: 1, kind: input, shape index: {}]
  %s2 = inlined_call_operand.vmem [shape: bf16[8,256], index: 2, kind: input, shape index: {}]
  %s3 = inlined_call_operand.vmem [shape: bf16[16,256], index: 3, kind: input, shape index: {}]
  %s4 = inlined_call_operand.vmem [shape: f32[1,256], index: 4, kind: input, shape index: {}, may-alias: {4,6}]
  %s5 = inlined_call_operand.vmem [shape: bf16[128,128], index: 5, kind: input, shape index: {}]
  %s6 = inlined_call_operand.vmem [shape: f32[1,256], index: 6, kind: input, shape index: {}, may-alias: {4,6}]
  %s7 = inlined_call_operand.vmem [shape: f32[256,256], index: 7, kind: output, shape index: {0}]
  %s8 = inlined_call_operand.vmem [shape: f32[8,256], index: 8, kind: output, shape index: {1}]
  %9 = xla_tuple %s7, %s8
  %s10 = sld [smem:[#allocation0]]
  $region46: #{_lambda_.1} parent=0
    _
  %s12 = ssub.s32 1, %s10
  %s13 = scalar_select 0, %s12, %s10
  // Predicated region
  $region2: #{_lambda_.1} parent=0 // pred_check
    _
  $region3: #{_lambda_.1} parent=0 // pred_check_branch
    %15 = sbr.rel (0) target = $region5
  $region4: #{_lambda_.1} parent=0 // pred_region
    _
  $region5: #{_lambda_.1} parent=0 // pred_fallthru
    _
  // Predicated region
  $region6: #{_lambda_.1} parent=0 // pred_check
    _
  $region7: #{_lambda_.1} parent=0 // pred_check_branch
    %17 = sbr.rel (0) target = $region9
  $region8: #{_lambda_.1} parent=0 // pred_region
    _
  $region9: #{_lambda_.1} parent=0 // pred_fallthru
    _
  // Predicated region
  $region10: #{_lambda_.1} parent=0 // pred_check
    _
  $region11: #{_lambda_.1} parent=0 // pred_check_branch
    %19 = sbr.rel (0) target = $region13
  $region12: #{_lambda_.1} parent=0 // pred_region
    _
  $region13: #{_lambda_.1} parent=0 // pred_fallthru
    _
  // Predicated region
  $region14: #{_lambda_.1} parent=0 // pred_check
    _
  $region15: #{_lambda_.1} parent=0 // pred_check_branch
    %21 = sbr.rel (0) target = $region17
  $region16: #{_lambda_.1} parent=0 // pred_region
    _
  $region17: #{_lambda_.1} parent=0 // pred_fallthru
    _
  // Predicated region
  $region18: #{_lambda_.1} parent=0 // pred_check
    _
  $region19: #{_lambda_.1} parent=0 // pred_check_branch
    %23 = sbr.rel (0) target = $region21
  $region20: #{_lambda_.1} parent=0 // pred_region
    _
  $region21: #{_lambda_.1} parent=0 // pred_fallthru
    _
  // Predicated region
  $region22: #{_lambda_.1} parent=0 // pred_check
    _
  $region23: #{_lambda_.1} parent=0 // pred_check_branch
    %25 = sbr.rel (0) target = $region25
  $region24: #{_lambda_.1} parent=0 // pred_region
    _
  $region25: #{_lambda_.1} parent=0 // pred_fallthru
    _
  // Predicated region
  $region26: #{_lambda_.1} parent=0 // pred_check
    _
  $region27: #{_lambda_.1} parent=0 // pred_check_branch
    %27 = sbr.rel (0) target = $region29
  $region28: #{_lambda_.1} parent=0 // pred_region
    _
  $region29: #{_lambda_.1} parent=0 // pred_fallthru
    _
  %v29 = vld [vmem:[%s0] sm:$0xf]
  %v30 = vld [vmem:[%s0 + $0x4] sm:$0xf]
  %v31 = vld [vmem:[%s0 + $0x8] sm:$0xf]
  %v32 = vld [vmem:[%s0 + $0xc] sm:$0xf]
  %v33 = vld [vmem:[%s0 + $0x10] sm:$0xf]
  %v34 = vld [vmem:[%s0 + $0x14] sm:$0xf]
  %v35 = vld [vmem:[%s0 + $0x18] sm:$0xf]
  %v36 = vld [vmem:[%s0 + $0x1c] sm:$0xf]
  %v37 = vld [vmem:[%s0 + $0x20] sm:$0xf]
  %v38 = vld [vmem:[%s0 + $0x24] sm:$0xf]
  %v39 = vld [vmem:[%s0 + $0x28] sm:$0xf]
  %v40 = vld [vmem:[%s0 + $0x2c] sm:$0xf]
  %v41 = vld [vmem:[%s0 + $0x30] sm:$0xf]
  %v42 = vld [vmem:[%s0 + $0x34] sm:$0xf]
  %v43 = vld [vmem:[%s0 + $0x38] sm:$0xf]
  %v44 = vld [vmem:[%s0 + $0x3c] sm:$0xf]
  %v45 = vld [vmem:[%s0 + $0x40] sm:$0xf]
  %v46 = vld [vmem:[%s0 + $0x44] sm:$0xf]
  %v47 = vld [vmem:[%s0 + $0x48] sm:$0xf]
  %v48 = vld [vmem:[%s0 + $0x4c] sm:$0xf]
  %v49 = vld [vmem:[%s0 + $0x50] sm:$0xf]
  %v50 = vld [vmem:[%s0 + $0x54] sm:$0xf]
  %v51 = vld [vmem:[%s0 + $0x58] sm:$0xf]
  %v52 = vld [vmem:[%s0 + $0x5c] sm:$0xf]
  %v53 = vld [vmem:[%s0 + $0x60] sm:$0xf]
  %v54 = vld [vmem:[%s0 + $0x64] sm:$0xf]
  %v55 = vld [vmem:[%s0 + $0x68] sm:$0xf]
  %v56 = vld [vmem:[%s0 + $0x6c] sm:$0xf]
  %v57 = vld [vmem:[%s0 + $0x70] sm:$0xf]
  %v58 = vld [vmem:[%s0 + $0x74] sm:$0xf]
  %v59 = vld [vmem:[%s0 + $0x78] sm:$0xf]
  %v60 = vld [vmem:[%s0 + $0x7c] sm:$0xf]
  %v61 = vld [vmem:[%s1] sm:$0xff]
  %v62 = vld [vmem:[%s1 + $0x8] sm:$0xff]
  %v63 = vld [vmem:[%s1 + $0x10] sm:$0xff]
  %v64 = vld [vmem:[%s1 + $0x18] sm:$0xff]
  %v65 = vld [vmem:[%s1 + $0x20] sm:$0xff]
  %v66 = vld [vmem:[%s1 + $0x28] sm:$0xff]
  %v67 = vld [vmem:[%s1 + $0x30] sm:$0xff]
  %v68 = vld [vmem:[%s1 + $0x38] sm:$0xff]
  %v69 = vld [vmem:[%s1 + $0x40] sm:$0xff]
  %v70 = vld [vmem:[%s1 + $0x48] sm:$0xff]
  %v71 = vld [vmem:[%s1 + $0x50] sm:$0xff]
  %v72 = vld [vmem:[%s1 + $0x58] sm:$0xff]
  %v73 = vld [vmem:[%s1 + $0x60] sm:$0xff]
  %v74 = vld [vmem:[%s1 + $0x68] sm:$0xff]
  %v75 = vld [vmem:[%s1 + $0x70] sm:$0xff]
  %v76 = vld [vmem:[%s1 + $0x78] sm:$0xff]
  %v77 = vld [vmem:[%s1 + $0x80] sm:$0xff]
  %v78 = vld [vmem:[%s1 + $0x88] sm:$0xff]
  %v79 = vld [vmem:[%s1 + $0x90] sm:$0xff]
  %v80 = vld [vmem:[%s1 + $0x98] sm:$0xff]
  %v81 = vld [vmem:[%s1 + $0xa0] sm:$0xff]
  %v82 = vld [vmem:[%s1 + $0xa8] sm:$0xff]
  %v83 = vld [vmem:[%s1 + $0xb0] sm:$0xff]
  %v84 = vld [vmem:[%s1 + $0xb8] sm:$0xff]
  %v85 = vld [vmem:[%s1 + $0xc0] sm:$0xff]
  %v86 = vld [vmem:[%s1 + $0xc8] sm:$0xff]
  %v87 = vld [vmem:[%s1 + $0xd0] sm:$0xff]
  %v88 = vld [vmem:[%s1 + $0xd8] sm:$0xff]
  %v89 = vld [vmem:[%s1 + $0xe0] sm:$0xff]
  %v90 = vld [vmem:[%s1 + $0xe8] sm:$0xff]
  %v91 = vld [vmem:[%s1 + $0xf0] sm:$0xff]
  %v92 = vld [vmem:[%s1 + $0xf8] sm:$0xff]
  %v93 = vld [vmem:[%s2] sm:$0xff]
  %v94 = vld [vmem:[%s3] sm:$0xff]
  %v95 = vld [vmem:[%s3 + $0x8] sm:$0xff]
  %v96 = vld [vmem:[%s4] sm:$0x3]
  %v97 = vld [vmem:[%s5] sm:$0xf]
  %v98 = vld [vmem:[%s5 + $0x4] sm:$0xf]
  %v99 = vld [vmem:[%s5 + $0x8] sm:$0xf]
  %v100 = vld [vmem:[%s5 + $0xc] sm:$0xf]
  %v101 = vld [vmem:[%s5 + $0x10] sm:$0xf]
  %v102 = vld [vmem:[%s5 + $0x14] sm:$0xf]
  %v103 = vld [vmem:[%s5 + $0x18] sm:$0xf]
  %v104 = vld [vmem:[%s5 + $0x1c] sm:$0xf]
  %v105 = vld [vmem:[%s5 + $0x20] sm:$0xf]
  %v106 = vld [vmem:[%s5 + $0x24] sm:$0xf]
  %v107 = vld [vmem:[%s5 + $0x28] sm:$0xf]
  %v108 = vld [vmem:[%s5 + $0x2c] sm:$0xf]
  %v109 = vld [vmem:[%s5 + $0x30] sm:$0xf]
  %v110 = vld [vmem:[%s5 + $0x34] sm:$0xf]
  %v111 = vld [vmem:[%s5 + $0x38] sm:$0xf]
  %v112 = vld [vmem:[%s5 + $0x3c] sm:$0xf]
  %v113 = vld [vmem:[%s6] sm:$0x3]
  %v146 = vunpack.c.l.b16 %v61
  %v147 = vunpack.c.h.b16 %v61
  %v148 = vunpack.c.l.b16 %v62
  %v149 = vunpack.c.h.b16 %v62
  %v150 = vunpack.c.l.b16 %v63
  %v151 = vunpack.c.h.b16 %v63
  %v152 = vunpack.c.l.b16 %v64
  %v153 = vunpack.c.h.b16 %v64
  %v154 = vunpack.c.l.b16 %v65
  %v155 = vunpack.c.h.b16 %v65
  %v156 = vunpack.c.l.b16 %v66
  %v157 = vunpack.c.h.b16 %v66
  %v158 = vunpack.c.l.b16 %v67
  %v159 = vunpack.c.h.b16 %v67
  %v160 = vunpack.c.l.b16 %v68
  %v161 = vunpack.c.h.b16 %v68
  %v162 = vunpack.c.l.b16 %v69
  %v163 = vunpack.c.h.b16 %v69
  %v164 = vunpack.c.l.b16 %v70
  %v165 = vunpack.c.h.b16 %v70
  %v166 = vunpack.c.l.b16 %v71
  %v167 = vunpack.c.h.b16 %v71
  %v168 = vunpack.c.l.b16 %v72
  %v169 = vunpack.c.h.b16 %v72
  %v170 = vunpack.c.l.b16 %v73
  %v171 = vunpack.c.h.b16 %v73
  %v172 = vunpack.c.l.b16 %v74
  %v173 = vunpack.c.h.b16 %v74
  %v174 = vunpack.c.l.b16 %v75
  %v175 = vunpack.c.h.b16 %v75
  %v176 = vunpack.c.l.b16 %v76
  %v177 = vunpack.c.h.b16 %v76
  %v178 = vunpack.c.l.b16 %v77
  %v179 = vunpack.c.h.b16 %v77
  %v180 = vunpack.c.l.b16 %v78
  %v181 = vunpack.c.h.b16 %v78
  %v182 = vunpack.c.l.b16 %v79
  %v183 = vunpack.c.h.b16 %v79
  %v184 = vunpack.c.l.b16 %v80
  %v185 = vunpack.c.h.b16 %v80
  %v186 = vunpack.c.l.b16 %v81
  %v187 = vunpack.c.h.b16 %v81
  %v188 = vunpack.c.l.b16 %v82
  %v189 = vunpack.c.h.b16 %v82
  %v190 = vunpack.c.l.b16 %v83
  %v191 = vunpack.c.h.b16 %v83
  %v192 = vunpack.c.l.b16 %v84
  %v193 = vunpack.c.h.b16 %v84
  %v194 = vunpack.c.l.b16 %v85
  %v195 = vunpack.c.h.b16 %v85
  %v196 = vunpack.c.l.b16 %v86
  %v197 = vunpack.c.h.b16 %v86
  %v198 = vunpack.c.l.b16 %v87
  %v199 = vunpack.c.h.b16 %v87
  %v200 = vunpack.c.l.b16 %v88
  %v201 = vunpack.c.h.b16 %v88
  %v202 = vunpack.c.l.b16 %v89
  %v203 = vunpack.c.h.b16 %v89
  %v204 = vunpack.c.l.b16 %v90
  %v205 = vunpack.c.h.b16 %v90
  %v206 = vunpack.c.l.b16 %v91
  %v207 = vunpack.c.h.b16 %v91
  %v208 = vunpack.c.l.b16 %v92
  %v209 = vunpack.c.h.b16 %v92
  %v210 = vpack.c.b16 %v148, %v146
  %v211 = vpack.c.b16 %v149, %v147
  %v212 = vpack.c.b16 %v152, %v150
  %v213 = vpack.c.b16 %v153, %v151
  %v214 = vpack.c.b16 %v156, %v154
  %v215 = vpack.c.b16 %v157, %v155
  %v216 = vpack.c.b16 %v160, %v158
  %v217 = vpack.c.b16 %v161, %v159
  %v218 = vpack.c.b16 %v164, %v162
  %v219 = vpack.c.b16 %v165, %v163
  %v220 = vpack.c.b16 %v168, %v166
  %v221 = vpack.c.b16 %v169, %v167
  %v222 = vpack.c.b16 %v172, %v170
  %v223 = vpack.c.b16 %v173, %v171
  %v224 = vpack.c.b16 %v176, %v174
  %v225 = vpack.c.b16 %v177, %v175
  %v226 = vpack.c.b16 %v180, %v178
  %v227 = vpack.c.b16 %v181, %v179
  %v228 = vpack.c.b16 %v184, %v182
  %v229 = vpack.c.b16 %v185, %v183
  %v230 = vpack.c.b16 %v188, %v186
  %v231 = vpack.c.b16 %v189, %v187
  %v232 = vpack.c.b16 %v192, %v190
  %v233 = vpack.c.b16 %v193, %v191
  %v234 = vpack.c.b16 %v196, %v194
  %v235 = vpack.c.b16 %v197, %v195
  %v236 = vpack.c.b16 %v200, %v198
  %v237 = vpack.c.b16 %v201, %v199
  %v238 = vpack.c.b16 %v204, %v202
  %v239 = vpack.c.b16 %v205, %v203
  %v240 = vpack.c.b16 %v208, %v206
  %v241 = vpack.c.b16 %v209, %v207
  %v306 = vunpack.c.l.b16 %v29
  %v307 = vunpack.c.l.b16 %v30
  %v308 = vunpack.c.l.b16 %v31
  %v309 = vunpack.c.l.b16 %v32
  %v310 = vunpack.c.l.b16 %v33
  %v311 = vunpack.c.l.b16 %v34
  %v312 = vunpack.c.l.b16 %v35
  %v313 = vunpack.c.l.b16 %v36
  %v314 = vunpack.c.l.b16 %v37
  %v315 = vunpack.c.l.b16 %v38
  %v316 = vunpack.c.l.b16 %v39
  %v317 = vunpack.c.l.b16 %v40
  %v318 = vunpack.c.l.b16 %v41
  %v319 = vunpack.c.l.b16 %v42
  %v320 = vunpack.c.l.b16 %v43
  %v321 = vunpack.c.l.b16 %v44
  %v322 = vunpack.c.l.b16 %v45
  %v323 = vunpack.c.l.b16 %v46
  %v324 = vunpack.c.l.b16 %v47
  %v325 = vunpack.c.l.b16 %v48
  %v326 = vunpack.c.l.b16 %v49
  %v327 = vunpack.c.l.b16 %v50
  %v328 = vunpack.c.l.b16 %v51
  %v329 = vunpack.c.l.b16 %v52
  %v330 = vunpack.c.l.b16 %v53
  %v331 = vunpack.c.l.b16 %v54
  %v332 = vunpack.c.l.b16 %v55
  %v333 = vunpack.c.l.b16 %v56
  %v334 = vunpack.c.l.b16 %v57
  %v335 = vunpack.c.l.b16 %v58
  %v336 = vunpack.c.l.b16 %v59
  %v337 = vunpack.c.l.b16 %v60
  %v338 = vpack.c.b16 %v307, %v306
  %v339 = vpack.c.b16 %v309, %v308
  %v340 = vpack.c.b16 %v311, %v310
  %v341 = vpack.c.b16 %v313, %v312
  %v342 = vpack.c.b16 %v315, %v314
  %v343 = vpack.c.b16 %v317, %v316
  %v344 = vpack.c.b16 %v319, %v318
  %v345 = vpack.c.b16 %v321, %v320
  %v346 = vpack.c.b16 %v323, %v322
  %v347 = vpack.c.b16 %v325, %v324
  %v348 = vpack.c.b16 %v327, %v326
  %v349 = vpack.c.b16 %v329, %v328
  %v350 = vpack.c.b16 %v331, %v330
  %v351 = vpack.c.b16 %v333, %v332
  %v352 = vpack.c.b16 %v335, %v334
  %v353 = vpack.c.b16 %v337, %v336
  %370 = vmatprep.subr.bf16.mxu0 0
  %371 = vmatpush1.bf16.msra.mxu0 %v345
  %372 = vmatprep.subr.bf16.mxu0 0
  %373 = vmatpush1.bf16.msra.mxu0 %v344
  %374 = vmatprep.subr.bf16.mxu0 0
  %375 = vmatpush1.bf16.msra.mxu0 %v343
  %376 = vmatprep.subr.bf16.mxu0 0
  %377 = vmatpush1.bf16.msra.mxu0 %v342
  %378 = vmatprep.subr.bf16.mxu0 0
  %379 = vmatpush1.bf16.msra.mxu0 %v341
  %380 = vmatprep.subr.bf16.mxu0 0
  %381 = vmatpush1.bf16.msra.mxu0 %v340
  %382 = vmatprep.subr.bf16.mxu0 0
  %383 = vmatpush1.bf16.msra.mxu0 %v339
  %384 = vmatprep.subr.bf16.mxu0 0
  %385 = vmatpush1.bf16.msra.mxu0 %v338
  %386 = vmatprep.subr.bf16.mxu0 0
  %387 = vmatpush2.bf16.msra.mxu0 %v353
  %388 = vmatprep.subr.bf16.mxu0 0
  %389 = vmatpush2.bf16.msra.mxu0 %v352
  %390 = vmatprep.subr.bf16.mxu0 0
  %391 = vmatpush2.bf16.msra.mxu0 %v351
  %392 = vmatprep.subr.bf16.mxu0 0
  %393 = vmatpush2.bf16.msra.mxu0 %v350
  %394 = vmatprep.subr.bf16.mxu0 0
  %395 = vmatpush2.bf16.msra.mxu0 %v349
  %396 = vmatprep.subr.bf16.mxu0 0
  %397 = vmatpush2.bf16.msra.mxu0 %v348
  %398 = vmatprep.subr.bf16.mxu0 0
  %399 = vmatpush2.bf16.msra.mxu0 %v347
  %400 = vmatprep.subr.bf16.mxu0 0
  %401 = vmatpush2.bf16.msra.mxu0 %v346
  %402 = vmatprep.mubr.bf16.mxu0 %v211
  %403 = vmatmul.mubr.bf16.gmra.mxu0 %v210
  %v404 = vpop.f32.mrf.mxu0
  %v405 = vadd.f32 0.0, %v404
  %v406 = vpop.f32.mrf.mxu0
  %v407 = vpop.f32.mrf.mxu0
  %v408 = vadd.f32 0.0, %v407
  %v409 = vpop.f32.mrf.mxu0
  %410 = vmatprep.mubr.bf16.mxu0 %v213
  %411 = vmatmul.mubr.bf16.gmra.mxu0 %v212
  %v412 = vpop.f32.mrf.mxu0
  %v413 = vadd.f32 0.0, %v412
  %v414 = vpop.f32.mrf.mxu0
  %v415 = vpop.f32.mrf.mxu0
  %v416 = vadd.f32 0.0, %v415
  %v417 = vpop.f32.mrf.mxu0
  %418 = vmatprep.mubr.bf16.mxu0 %v215
  %419 = vmatmul.mubr.bf16.gmra.mxu0 %v214
  %v420 = vpop.f32.mrf.mxu0
  %v421 = vadd.f32 0.0, %v420
  %v422 = vpop.f32.mrf.mxu0
  %v423 = vpop.f32.mrf.mxu0
  %v424 = vadd.f32 0.0, %v423
  %v425 = vpop.f32.mrf.mxu0
  %426 = vmatprep.mubr.bf16.mxu0 %v217
  %427 = vmatmul.mubr.bf16.gmra.mxu0 %v216
  %v428 = vpop.f32.mrf.mxu0
  %v429 = vadd.f32 0.0, %v428
  %v430 = vpop.f32.mrf.mxu0
  %v431 = vpop.f32.mrf.mxu0
  %v432 = vadd.f32 0.0, %v431
  %v433 = vpop.f32.mrf.mxu0
  %434 = vmatprep.mubr.bf16.mxu0 %v219
  %435 = vmatmul.mubr.bf16.gmra.mxu0 %v218
  %v436 = vpop.f32.mrf.mxu0
  %v437 = vadd.f32 0.0, %v436
  %v438 = vpop.f32.mrf.mxu0
  %v439 = vpop.f32.mrf.mxu0
  %v440 = vadd.f32 0.0, %v439
  %v441 = vpop.f32.mrf.mxu0
  %442 = vmatprep.mubr.bf16.mxu0 %v221
  %443 = vmatmul.mubr.bf16.gmra.mxu0 %v220
  %v444 = vpop.f32.mrf.mxu0
  %v445 = vadd.f32 0.0, %v444
  %v446 = vpop.f32.mrf.mxu0
  %v447 = vpop.f32.mrf.mxu0
  %v448 = vadd.f32 0.0, %v447
  %v449 = vpop.f32.mrf.mxu0
  %450 = vmatprep.mubr.bf16.mxu0 %v223
  %451 = vmatmul.mubr.bf16.gmra.mxu0 %v222
  %v452 = vpop.f32.mrf.mxu0
  %v453 = vadd.f32 0.0, %v452
  %v454 = vpop.f32.mrf.mxu0
  %v455 = vpop.f32.mrf.mxu0
  %v456 = vadd.f32 0.0, %v455
  %v457 = vpop.f32.mrf.mxu0
  %458 = vmatprep.mubr.bf16.mxu0 %v225
  %459 = vmatmul.mubr.bf16.gmra.mxu0 %v224
  %v460 = vpop.f32.mrf.mxu0
  %v461 = vadd.f32 0.0, %v460
  %v462 = vpop.f32.mrf.mxu0
  %v463 = vpop.f32.mrf.mxu0
  %v464 = vadd.f32 0.0, %v463
  %v465 = vpop.f32.mrf.mxu0
  %466 = vmatprep.mubr.bf16.mxu0 %v227
  %467 = vmatmul.mubr.bf16.gmra.mxu0 %v226
  %v468 = vpop.f32.mrf.mxu0
  %v469 = vadd.f32 0.0, %v468
  %v470 = vpop.f32.mrf.mxu0
  %v471 = vpop.f32.mrf.mxu0
  %v472 = vadd.f32 0.0, %v471
  %v473 = vpop.f32.mrf.mxu0
  %474 = vmatprep.mubr.bf16.mxu0 %v229
  %475 = vmatmul.mubr.bf16.gmra.mxu0 %v228
  %v476 = vpop.f32.mrf.mxu0
  %v477 = vadd.f32 0.0, %v476
  %v478 = vpop.f32.mrf.mxu0
  %v479 = vpop.f32.mrf.mxu0
  %v480 = vadd.f32 0.0, %v479
  %v481 = vpop.f32.mrf.mxu0
  %482 = vmatprep.mubr.bf16.mxu0 %v231
  %483 = vmatmul.mubr.bf16.gmra.mxu0 %v230
  %v484 = vpop.f32.mrf.mxu0
  %v485 = vadd.f32 0.0, %v484
  %v486 = vpop.f32.mrf.mxu0
  %v487 = vpop.f32.mrf.mxu0
  %v488 = vadd.f32 0.0, %v487
  %v489 = vpop.f32.mrf.mxu0
  %490 = vmatprep.mubr.bf16.mxu0 %v233
  %491 = vmatmul.mubr.bf16.gmra.mxu0 %v232
  %v492 = vpop.f32.mrf.mxu0
  %v493 = vadd.f32 0.0, %v492
  %v494 = vpop.f32.mrf.mxu0
  %v495 = vpop.f32.mrf.mxu0
  %v496 = vadd.f32 0.0, %v495
  %v497 = vpop.f32.mrf.mxu0
  %498 = vmatprep.mubr.bf16.mxu0 %v235
  %499 = vmatmul.mubr.bf16.gmra.mxu0 %v234
  %v500 = vpop.f32.mrf.mxu0
  %v501 = vadd.f32 0.0, %v500
  %v502 = vpop.f32.mrf.mxu0
  %v503 = vpop.f32.mrf.mxu0
  %v504 = vadd.f32 0.0, %v503
  %v505 = vpop.f32.mrf.mxu0
  %506 = vmatprep.mubr.bf16.mxu0 %v237
  %507 = vmatmul.mubr.bf16.gmra.mxu0 %v236
  %v508 = vpop.f32.mrf.mxu0
  %v509 = vadd.f32 0.0, %v508
  %v510 = vpop.f32.mrf.mxu0
  %v511 = vpop.f32.mrf.mxu0
  %v512 = vadd.f32 0.0, %v511
  %v513 = vpop.f32.mrf.mxu0
  %514 = vmatprep.mubr.bf16.mxu0 %v239
  %515 = vmatmul.mubr.bf16.gmra.mxu0 %v238
  %v516 = vpop.f32.mrf.mxu0
  %v517 = vadd.f32 0.0, %v516
  %v518 = vpop.f32.mrf.mxu0
  %v519 = vpop.f32.mrf.mxu0
  %v520 = vadd.f32 0.0, %v519
  %v521 = vpop.f32.mrf.mxu0
  %522 = vmatprep.mubr.bf16.mxu0 %v241
  %523 = vmatmul.mubr.bf16.gmra.mxu0 %v240
  %v524 = vpop.f32.mrf.mxu0
  %v525 = vadd.f32 0.0, %v524
  %v526 = vpop.f32.mrf.mxu0
  %v527 = vpop.f32.mrf.mxu0
  %v528 = vadd.f32 0.0, %v527
  %v529 = vpop.f32.mrf.mxu0
  %530 = vdwg.mxu0
  %v531 = vpack.c.bf16 %v408, %v405
  %v532 = vpack.c.bf16 %v416, %v413
  %v533 = vpack.c.bf16 %v424, %v421
  %v534 = vpack.c.bf16 %v432, %v429
  %v535 = vpack.c.bf16 %v440, %v437
  %v536 = vpack.c.bf16 %v448, %v445
  %v537 = vpack.c.bf16 %v456, %v453
  %v538 = vpack.c.bf16 %v464, %v461
  %v539 = vpack.c.bf16 %v472, %v469
  %v540 = vpack.c.bf16 %v480, %v477
  %v541 = vpack.c.bf16 %v488, %v485
  %v542 = vpack.c.bf16 %v496, %v493
  %v543 = vpack.c.bf16 %v504, %v501
  %v544 = vpack.c.bf16 %v512, %v509
  %v545 = vpack.c.bf16 %v520, %v517
  %v546 = vpack.c.bf16 %v528, %v525
  %v548 = vlaneseq
  %v549 = vshrl.u32 %v548, 7
  %v550 = vsub.s32 0, %v549
  %v551 = vrot.slane %v96, %v550
  %v552 = vlaneseq
  %v553 = vshrl.u32 %v552, 7
  %v554 = vsub.s32 1, %v553
  %v555 = vrot.slane %v96, %v554
  %v560 = vunpack.c.l.b16 %v94
  %v561 = vunpack.c.h.b16 %v94
  %v562 = vunpack.c.l.b16 %v95
  %v563 = vunpack.c.h.b16 %v95
  %v564 = vpack.c.b16 %v562, %v560
  %v565 = vpack.c.b16 %v563, %v561
  %vm568 = vcmask 130048
  %v570 = vsel %vm568, %v531, 0
  %v573 = vsel %vm568, %v532, 0
  %v576 = vsel %vm568, %v533, 0
  %v579 = vsel %vm568, %v534, 0
  %v582 = vsel %vm568, %v535, 0
  %v585 = vsel %vm568, %v536, 0
  %v588 = vsel %vm568, %v537, 0
  %v591 = vsel %vm568, %v538, 0
  %v594 = vsel %vm568, %v539, 0
  %v597 = vsel %vm568, %v540, 0
  %v600 = vsel %vm568, %v541, 0
  %v603 = vsel %vm568, %v542, 0
  %v606 = vsel %vm568, %v543, 0
  %v609 = vsel %vm568, %v544, 0
  %v612 = vsel %vm568, %v545, 0
  %v615 = vsel %vm568, %v546, 0
  %617 = vmatprep.subr.bf16.mxu0 0
  %618 = vmatpush1.bf16.msra.mxu0 0
  %619 = vmatprep.subr.bf16.mxu0 0
  %620 = vmatpush1.bf16.msra.mxu0 0
  %621 = vmatprep.subr.bf16.mxu0 0
  %622 = vmatpush1.bf16.msra.mxu0 0
  %623 = vmatprep.subr.bf16.mxu0 0
  %624 = vmatpush1.bf16.msra.mxu0 0
  %625 = vmatprep.subr.bf16.mxu0 0
  %626 = vmatpush1.bf16.msra.mxu0 0
  %627 = vmatprep.subr.bf16.mxu0 0
  %628 = vmatpush1.bf16.msra.mxu0 0
  %629 = vmatprep.subr.bf16.mxu0 0
  %630 = vmatpush1.bf16.msra.mxu0 0
  %631 = vmatprep.subr.bf16.mxu0 %v565
  %632 = vmatpush1.bf16.msra.mxu0 %v564
  %633 = vmatprep.subr.bf16.mxu0 0
  %634 = vmatpush2.bf16.msra.mxu0 0
  %635 = vmatprep.subr.bf16.mxu0 0
  %636 = vmatpush2.bf16.msra.mxu0 0
  %637 = vmatprep.subr.bf16.mxu0 0
  %638 = vmatpush2.bf16.msra.mxu0 0
  %639 = vmatprep.subr.bf16.mxu0 0
  %640 = vmatpush2.bf16.msra.mxu0 0
  %641 = vmatprep.subr.bf16.mxu0 0
  %642 = vmatpush2.bf16.msra.mxu0 0
  %643 = vmatprep.subr.bf16.mxu0 0
  %644 = vmatpush2.bf16.msra.mxu0 0
  %645 = vmatprep.subr.bf16.mxu0 0
  %646 = vmatpush2.bf16.msra.mxu0 0
  %647 = vmatprep.subr.bf16.mxu0 0
  %648 = vmatpush2.bf16.msra.mxu0 0
  %649 = vmatprep.mubr.bf16.mxu0 0
  %650 = vmatmul.mubr.bf16.gmra.mxu0 %v570
  %v651 = vpop.f32.mrf.mxu0
  %v652 = vadd.f32 %v551, %v651
  %v653 = vpop.f32.mrf.mxu0
  %v654 = vadd.f32 %v555, %v653
  %v655 = vpop.f32.mrf.mxu0
  %v656 = vadd.f32 %v551, %v655
  %v657 = vpop.f32.mrf.mxu0
  %v658 = vadd.f32 %v555, %v657
  %659 = vmatprep.mubr.bf16.mxu0 0
  %660 = vmatmul.mubr.bf16.gmra.mxu0 %v573
  %v661 = vpop.f32.mrf.mxu0
  %v662 = vadd.f32 %v551, %v661
  %v663 = vpop.f32.mrf.mxu0
  %v664 = vadd.f32 %v555, %v663
  %v665 = vpop.f32.mrf.mxu0
  %v666 = vadd.f32 %v551, %v665
  %v667 = vpop.f32.mrf.mxu0
  %v668 = vadd.f32 %v555, %v667
  %669 = vmatprep.mubr.bf16.mxu0 0
  %670 = vmatmul.mubr.bf16.gmra.mxu0 %v576
  %v671 = vpop.f32.mrf.mxu0
  %v672 = vadd.f32 %v551, %v671
  %v673 = vpop.f32.mrf.mxu0
  %v674 = vadd.f32 %v555, %v673
  %v675 = vpop.f32.mrf.mxu0
  %v676 = vadd.f32 %v551, %v675
  %v677 = vpop.f32.mrf.mxu0
  %v678 = vadd.f32 %v555, %v677
  %679 = vmatprep.mubr.bf16.mxu0 0
  %680 = vmatmul.mubr.bf16.gmra.mxu0 %v579
  %v681 = vpop.f32.mrf.mxu0
  %v682 = vadd.f32 %v551, %v681
  %v683 = vpop.f32.mrf.mxu0
  %v684 = vadd.f32 %v555, %v683
  %v685 = vpop.f32.mrf.mxu0
  %v686 = vadd.f32 %v551, %v685
  %v687 = vpop.f32.mrf.mxu0
  %v688 = vadd.f32 %v555, %v687
  %689 = vmatprep.mubr.bf16.mxu0 0
  %690 = vmatmul.mubr.bf16.gmra.mxu0 %v582
  %v691 = vpop.f32.mrf.mxu0
  %v692 = vadd.f32 %v551, %v691
  %v693 = vpop.f32.mrf.mxu0
  %v694 = vadd.f32 %v555, %v693
  %v695 = vpop.f32.mrf.mxu0
  %v696 = vadd.f32 %v551, %v695
  %v697 = vpop.f32.mrf.mxu0
  %v698 = vadd.f32 %v555, %v697
  %699 = vmatprep.mubr.bf16.mxu0 0
  %700 = vmatmul.mubr.bf16.gmra.mxu0 %v585
  %v701 = vpop.f32.mrf.mxu0
  %v702 = vadd.f32 %v551, %v701
  %v703 = vpop.f32.mrf.mxu0
  %v704 = vadd.f32 %v555, %v703
  %v705 = vpop.f32.mrf.mxu0
  %v706 = vadd.f32 %v551, %v705
  %v707 = vpop.f32.mrf.mxu0
  %v708 = vadd.f32 %v555, %v707
  %709 = vmatprep.mubr.bf16.mxu0 0
  %710 = vmatmul.mubr.bf16.gmra.mxu0 %v588
  %v711 = vpop.f32.mrf.mxu0
  %v712 = vadd.f32 %v551, %v711
  %v713 = vpop.f32.mrf.mxu0
  %v714 = vadd.f32 %v555, %v713
  %v715 = vpop.f32.mrf.mxu0
  %v716 = vadd.f32 %v551, %v715
  %v717 = vpop.f32.mrf.mxu0
  %v718 = vadd.f32 %v555, %v717
  %719 = vmatprep.mubr.bf16.mxu0 0
  %720 = vmatmul.mubr.bf16.gmra.mxu0 %v591
  %v721 = vpop.f32.mrf.mxu0
  %v722 = vadd.f32 %v551, %v721
  %v723 = vpop.f32.mrf.mxu0
  %v724 = vadd.f32 %v555, %v723
  %v725 = vpop.f32.mrf.mxu0
  %v726 = vadd.f32 %v551, %v725
  %v727 = vpop.f32.mrf.mxu0
  %v728 = vadd.f32 %v555, %v727
  %729 = vmatprep.mubr.bf16.mxu0 0
  %730 = vmatmul.mubr.bf16.gmra.mxu0 %v594
  %v731 = vpop.f32.mrf.mxu0
  %v732 = vadd.f32 %v551, %v731
  %v733 = vpop.f32.mrf.mxu0
  %v734 = vadd.f32 %v555, %v733
  %v735 = vpop.f32.mrf.mxu0
  %v736 = vadd.f32 %v551, %v735
  %v737 = vpop.f32.mrf.mxu0
  %v738 = vadd.f32 %v555, %v737
  %739 = vmatprep.mubr.bf16.mxu0 0
  %740 = vmatmul.mubr.bf16.gmra.mxu0 %v597
  %v741 = vpop.f32.mrf.mxu0
  %v742 = vadd.f32 %v551, %v741
  %v743 = vpop.f32.mrf.mxu0
  %v744 = vadd.f32 %v555, %v743
  %v745 = vpop.f32.mrf.mxu0
  %v746 = vadd.f32 %v551, %v745
  %v747 = vpop.f32.mrf.mxu0
  %v748 = vadd.f32 %v555, %v747
  %749 = vmatprep.mubr.bf16.mxu0 0
  %750 = vmatmul.mubr.bf16.gmra.mxu0 %v600
  %v751 = vpop.f32.mrf.mxu0
  %v752 = vadd.f32 %v551, %v751
  %v753 = vpop.f32.mrf.mxu0
  %v754 = vadd.f32 %v555, %v753
  %v755 = vpop.f32.mrf.mxu0
  %v756 = vadd.f32 %v551, %v755
  %v757 = vpop.f32.mrf.mxu0
  %v758 = vadd.f32 %v555, %v757
  %759 = vmatprep.mubr.bf16.mxu0 0
  %760 = vmatmul.mubr.bf16.gmra.mxu0 %v603
  %v761 = vpop.f32.mrf.mxu0
  %v762 = vadd.f32 %v551, %v761
  %v763 = vpop.f32.mrf.mxu0
  %v764 = vadd.f32 %v555, %v763
  %v765 = vpop.f32.mrf.mxu0
  %v766 = vadd.f32 %v551, %v765
  %v767 = vpop.f32.mrf.mxu0
  %v768 = vadd.f32 %v555, %v767
  %769 = vmatprep.mubr.bf16.mxu0 0
  %770 = vmatmul.mubr.bf16.gmra.mxu0 %v606
  %v771 = vpop.f32.mrf.mxu0
  %v772 = vadd.f32 %v551, %v771
  %v773 = vpop.f32.mrf.mxu0
  %v774 = vadd.f32 %v555, %v773
  %v775 = vpop.f32.mrf.mxu0
  %v776 = vadd.f32 %v551, %v775
  %v777 = vpop.f32.mrf.mxu0
  %v778 = vadd.f32 %v555, %v777
  %779 = vmatprep.mubr.bf16.mxu0 0
  %780 = vmatmul.mubr.bf16.gmra.mxu0 %v609
  %v781 = vpop.f32.mrf.mxu0
  %v782 = vadd.f32 %v551, %v781
  %v783 = vpop.f32.mrf.mxu0
  %v784 = vadd.f32 %v555, %v783
  %v785 = vpop.f32.mrf.mxu0
  %v786 = vadd.f32 %v551, %v785
  %v787 = vpop.f32.mrf.mxu0
  %v788 = vadd.f32 %v555, %v787
  %789 = vmatprep.mubr.bf16.mxu0 0
  %790 = vmatmul.mubr.bf16.gmra.mxu0 %v612
  %v791 = vpop.f32.mrf.mxu0
  %v792 = vadd.f32 %v551, %v791
  %v793 = vpop.f32.mrf.mxu0
  %v794 = vadd.f32 %v555, %v793
  %v795 = vpop.f32.mrf.mxu0
  %v796 = vadd.f32 %v551, %v795
  %v797 = vpop.f32.mrf.mxu0
  %v798 = vadd.f32 %v555, %v797
  %799 = vmatprep.mubr.bf16.mxu0 0
  %800 = vmatmul.mubr.bf16.gmra.mxu0 %v615
  %v801 = vpop.f32.mrf.mxu0
  %v802 = vadd.f32 %v551, %v801
  %v803 = vpop.f32.mrf.mxu0
  %v804 = vadd.f32 %v555, %v803
  %v805 = vpop.f32.mrf.mxu0
  %v806 = vadd.f32 %v551, %v805
  %v807 = vpop.f32.mrf.mxu0
  %v808 = vadd.f32 %v555, %v807
  %809 = vdwg.mxu0
  %v810 = vmax.f32 %v652, 0.0
  %v811 = vmax.f32 %v654, 0.0
  %v812 = vmax.f32 %v656, 0.0
  %v813 = vmax.f32 %v658, 0.0
  %v814 = vmax.f32 %v662, 0.0
  %v815 = vmax.f32 %v664, 0.0
  %v816 = vmax.f32 %v666, 0.0
  %v817 = vmax.f32 %v668, 0.0
  %v818 = vmax.f32 %v672, 0.0
  %v819 = vmax.f32 %v674, 0.0
  %v820 = vmax.f32 %v676, 0.0
  %v821 = vmax.f32 %v678, 0.0
  %v822 = vmax.f32 %v682, 0.0
  %v823 = vmax.f32 %v684, 0.0
  %v824 = vmax.f32 %v686, 0.0
  %v825 = vmax.f32 %v688, 0.0
  %v826 = vmax.f32 %v692, 0.0
  %v827 = vmax.f32 %v694, 0.0
  %v828 = vmax.f32 %v696, 0.0
  %v829 = vmax.f32 %v698, 0.0
  %v830 = vmax.f32 %v702, 0.0
  %v831 = vmax.f32 %v704, 0.0
  %v832 = vmax.f32 %v706, 0.0
  %v833 = vmax.f32 %v708, 0.0
  %v834 = vmax.f32 %v712, 0.0
  %v835 = vmax.f32 %v714, 0.0
  %v836 = vmax.f32 %v716, 0.0
  %v837 = vmax.f32 %v718, 0.0
  %v838 = vmax.f32 %v722, 0.0
  %v839 = vmax.f32 %v724, 0.0
  %v840 = vmax.f32 %v726, 0.0
  %v841 = vmax.f32 %v728, 0.0
  %v842 = vmax.f32 %v732, 0.0
  %v843 = vmax.f32 %v734, 0.0
  %v844 = vmax.f32 %v736, 0.0
  %v845 = vmax.f32 %v738, 0.0
  %v846 = vmax.f32 %v742, 0.0
  %v847 = vmax.f32 %v744, 0.0
  %v848 = vmax.f32 %v746, 0.0
  %v849 = vmax.f32 %v748, 0.0
  %v850 = vmax.f32 %v752, 0.0
  %v851 = vmax.f32 %v754, 0.0
  %v852 = vmax.f32 %v756, 0.0
  %v853 = vmax.f32 %v758, 0.0
  %v854 = vmax.f32 %v762, 0.0
  %v855 = vmax.f32 %v764, 0.0
  %v856 = vmax.f32 %v766, 0.0
  %v857 = vmax.f32 %v768, 0.0
  %v858 = vmax.f32 %v772, 0.0
  %v859 = vmax.f32 %v774, 0.0
  %v860 = vmax.f32 %v776, 0.0
  %v861 = vmax.f32 %v778, 0.0
  %v862 = vmax.f32 %v782, 0.0
  %v863 = vmax.f32 %v784, 0.0
  %v864 = vmax.f32 %v786, 0.0
  %v865 = vmax.f32 %v788, 0.0
  %v866 = vmax.f32 %v792, 0.0
  %v867 = vmax.f32 %v794, 0.0
  %v868 = vmax.f32 %v796, 0.0
  %v869 = vmax.f32 %v798, 0.0
  %v870 = vmax.f32 %v802, 0.0
  %v871 = vmax.f32 %v804, 0.0
  %v872 = vmax.f32 %v806, 0.0
  %v873 = vmax.f32 %v808, 0.0
  %v874 = vpack.c.bf16 %v812, %v810
  %v875 = vpack.c.bf16 %v813, %v811
  %v876 = vpack.c.bf16 %v816, %v814
  %v877 = vpack.c.bf16 %v817, %v815
  %v878 = vpack.c.bf16 %v820, %v818
  %v879 = vpack.c.bf16 %v821, %v819
  %v880 = vpack.c.bf16 %v824, %v822
  %v881 = vpack.c.bf16 %v825, %v823
  %v882 = vpack.c.bf16 %v828, %v826
  %v883 = vpack.c.bf16 %v829, %v827
  %v884 = vpack.c.bf16 %v832, %v830
  %v885 = vpack.c.bf16 %v833, %v831
  %v886 = vpack.c.bf16 %v836, %v834
  %v887 = vpack.c.bf16 %v837, %v835
  %v888 = vpack.c.bf16 %v840, %v838
  %v889 = vpack.c.bf16 %v841, %v839
  %v890 = vpack.c.bf16 %v844, %v842
  %v891 = vpack.c.bf16 %v845, %v843
  %v892 = vpack.c.bf16 %v848, %v846
  %v893 = vpack.c.bf16 %v849, %v847
  %v894 = vpack.c.bf16 %v852, %v850
  %v895 = vpack.c.bf16 %v853, %v851
  %v896 = vpack.c.bf16 %v856, %v854
  %v897 = vpack.c.bf16 %v857, %v855
  %v898 = vpack.c.bf16 %v860, %v858
  %v899 = vpack.c.bf16 %v861, %v859
  %v900 = vpack.c.bf16 %v864, %v862
  %v901 = vpack.c.bf16 %v865, %v863
  %v902 = vpack.c.bf16 %v868, %v866
  %v903 = vpack.c.bf16 %v869, %v867
  %v904 = vpack.c.bf16 %v872, %v870
  %v905 = vpack.c.bf16 %v873, %v871
  %v922 = vunpack.c.l.b16 %v97
  %v923 = vunpack.c.l.b16 %v98
  %v924 = vunpack.c.l.b16 %v99
  %v925 = vunpack.c.l.b16 %v100
  %v926 = vunpack.c.l.b16 %v101
  %v927 = vunpack.c.l.b16 %v102
  %v928 = vunpack.c.l.b16 %v103
  %v929 = vunpack.c.l.b16 %v104
  %v930 = vunpack.c.l.b16 %v105
  %v931 = vunpack.c.l.b16 %v106
  %v932 = vunpack.c.l.b16 %v107
  %v933 = vunpack.c.l.b16 %v108
  %v934 = vunpack.c.l.b16 %v109
  %v935 = vunpack.c.l.b16 %v110
  %v936 = vunpack.c.l.b16 %v111
  %v937 = vunpack.c.l.b16 %v112
  %v938 = vpack.c.b16 %v923, %v922
  %v939 = vpack.c.b16 %v925, %v924
  %v940 = vpack.c.b16 %v927, %v926
  %v941 = vpack.c.b16 %v929, %v928
  %v942 = vpack.c.b16 %v931, %v930
  %v943 = vpack.c.b16 %v933, %v932
  %v944 = vpack.c.b16 %v935, %v934
  %v945 = vpack.c.b16 %v937, %v936
  %954 = vmatprep.subr.bf16.mxu0 0
  %955 = vmatpush1.bf16.msra.mxu0 %v945
  %956 = vmatprep.subr.bf16.mxu0 0
  %957 = vmatpush1.bf16.msra.mxu0 %v944
  %958 = vmatprep.subr.bf16.mxu0 0
  %959 = vmatpush1.bf16.msra.mxu0 %v943
  %960 = vmatprep.subr.bf16.mxu0 0
  %961 = vmatpush1.bf16.msra.mxu0 %v942
  %962 = vmatprep.subr.bf16.mxu0 0
  %963 = vmatpush1.bf16.msra.mxu0 %v941
  %964 = vmatprep.subr.bf16.mxu0 0
  %965 = vmatpush1.bf16.msra.mxu0 %v940
  %966 = vmatprep.subr.bf16.mxu0 0
  %967 = vmatpush1.bf16.msra.mxu0 %v939
  %968 = vmatprep.subr.bf16.mxu0 0
  %969 = vmatpush1.bf16.msra.mxu0 %v938
  %970 = vmatprep.subr.bf16.mxu0 0
  %971 = vmatpush2.bf16.msra.mxu0 0
  %972 = vmatprep.subr.bf16.mxu0 0
  %973 = vmatpush2.bf16.msra.mxu0 0
  %974 = vmatprep.subr.bf16.mxu0 0
  %975 = vmatpush2.bf16.msra.mxu0 0
  %976 = vmatprep.subr.bf16.mxu0 0
  %977 = vmatpush2.bf16.msra.mxu0 0
  %978 = vmatprep.subr.bf16.mxu0 0
  %979 = vmatpush2.bf16.msra.mxu0 0
  %980 = vmatprep.subr.bf16.mxu0 0
  %981 = vmatpush2.bf16.msra.mxu0 0
  %982 = vmatprep.subr.bf16.mxu0 0
  %983 = vmatpush2.bf16.msra.mxu0 0
  %984 = vmatprep.subr.bf16.mxu0 0
  %985 = vmatpush2.bf16.msra.mxu0 0
  %986 = vmatprep.mubr.bf16.mxu0 0
  %987 = vmatmul.mubr.bf16.gmra.mxu0 %v874
  %v988 = vpop.f32.mrf.mxu0
  %v989 = vadd.f32 0.0, %v988
  %v990 = vpop.f32.mrf.mxu0
  %v991 = vpop.f32.mrf.mxu0
  %v992 = vadd.f32 0.0, %v991
  %v993 = vpop.f32.mrf.mxu0
  %994 = vmatprep.mubr.bf16.mxu0 0
  %995 = vmatmul.mubr.bf16.gmra.mxu0 %v876
  %v996 = vpop.f32.mrf.mxu0
  %v997 = vadd.f32 0.0, %v996
  %v998 = vpop.f32.mrf.mxu0
  %v999 = vpop.f32.mrf.mxu0
  %v1000 = vadd.f32 0.0, %v999
  %v1001 = vpop.f32.mrf.mxu0
  %1002 = vmatprep.mubr.bf16.mxu0 0
  %1003 = vmatmul.mubr.bf16.gmra.mxu0 %v878
  %v1004 = vpop.f32.mrf.mxu0
  %v1005 = vadd.f32 0.0, %v1004
  %v1006 = vpop.f32.mrf.mxu0
  %v1007 = vpop.f32.mrf.mxu0
  %v1008 = vadd.f32 0.0, %v1007
  %v1009 = vpop.f32.mrf.mxu0
  %1010 = vmatprep.mubr.bf16.mxu0 0
  %1011 = vmatmul.mubr.bf16.gmra.mxu0 %v880
  %v1012 = vpop.f32.mrf.mxu0
  %v1013 = vadd.f32 0.0, %v1012
  %v1014 = vpop.f32.mrf.mxu0
  %v1015 = vpop.f32.mrf.mxu0
  %v1016 = vadd.f32 0.0, %v1015
  %v1017 = vpop.f32.mrf.mxu0
  %1018 = vmatprep.mubr.bf16.mxu0 0
  %1019 = vmatmul.mubr.bf16.gmra.mxu0 %v882
  %v1020 = vpop.f32.mrf.mxu0
  %v1021 = vadd.f32 0.0, %v1020
  %v1022 = vpop.f32.mrf.mxu0
  %v1023 = vpop.f32.mrf.mxu0
  %v1024 = vadd.f32 0.0, %v1023
  %v1025 = vpop.f32.mrf.mxu0
  %1026 = vmatprep.mubr.bf16.mxu0 0
  %1027 = vmatmul.mubr.bf16.gmra.mxu0 %v884
  %v1028 = vpop.f32.mrf.mxu0
  %v1029 = vadd.f32 0.0, %v1028
  %v1030 = vpop.f32.mrf.mxu0
  %v1031 = vpop.f32.mrf.mxu0
  %v1032 = vadd.f32 0.0, %v1031
  %v1033 = vpop.f32.mrf.mxu0
  %1034 = vmatprep.mubr.bf16.mxu0 0
  %1035 = vmatmul.mubr.bf16.gmra.mxu0 %v886
  %v1036 = vpop.f32.mrf.mxu0
  %v1037 = vadd.f32 0.0, %v1036
  %v1038 = vpop.f32.mrf.mxu0
  %v1039 = vpop.f32.mrf.mxu0
  %v1040 = vadd.f32 0.0, %v1039
  %v1041 = vpop.f32.mrf.mxu0
  %1042 = vmatprep.mubr.bf16.mxu0 0
  %1043 = vmatmul.mubr.bf16.gmra.mxu0 %v888
  %v1044 = vpop.f32.mrf.mxu0
  %v1045 = vadd.f32 0.0, %v1044
  %v1046 = vpop.f32.mrf.mxu0
  %v1047 = vpop.f32.mrf.mxu0
  %v1048 = vadd.f32 0.0, %v1047
  %v1049 = vpop.f32.mrf.mxu0
  %1050 = vmatprep.mubr.bf16.mxu0 0
  %1051 = vmatmul.mubr.bf16.gmra.mxu0 %v890
  %v1052 = vpop.f32.mrf.mxu0
  %v1053 = vadd.f32 0.0, %v1052
  %v1054 = vpop.f32.mrf.mxu0
  %v1055 = vpop.f32.mrf.mxu0
  %v1056 = vadd.f32 0.0, %v1055
  %v1057 = vpop.f32.mrf.mxu0
  %1058 = vmatprep.mubr.bf16.mxu0 0
  %1059 = vmatmul.mubr.bf16.gmra.mxu0 %v892
  %v1060 = vpop.f32.mrf.mxu0
  %v1061 = vadd.f32 0.0, %v1060
  %v1062 = vpop.f32.mrf.mxu0
  %v1063 = vpop.f32.mrf.mxu0
  %v1064 = vadd.f32 0.0, %v1063
  %v1065 = vpop.f32.mrf.mxu0
  %1066 = vmatprep.mubr.bf16.mxu0 0
  %1067 = vmatmul.mubr.bf16.gmra.mxu0 %v894
  %v1068 = vpop.f32.mrf.mxu0
  %v1069 = vadd.f32 0.0, %v1068
  %v1070 = vpop.f32.mrf.mxu0
  %v1071 = vpop.f32.mrf.mxu0
  %v1072 = vadd.f32 0.0, %v1071
  %v1073 = vpop.f32.mrf.mxu0
  %1074 = vmatprep.mubr.bf16.mxu0 0
  %1075 = vmatmul.mubr.bf16.gmra.mxu0 %v896
  %v1076 = vpop.f32.mrf.mxu0
  %v1077 = vadd.f32 0.0, %v1076
  %v1078 = vpop.f32.mrf.mxu0
  %v1079 = vpop.f32.mrf.mxu0
  %v1080 = vadd.f32 0.0, %v1079
  %v1081 = vpop.f32.mrf.mxu0
  %1082 = vmatprep.mubr.bf16.mxu0 0
  %1083 = vmatmul.mubr.bf16.gmra.mxu0 %v898
  %v1084 = vpop.f32.mrf.mxu0
  %v1085 = vadd.f32 0.0, %v1084
  %v1086 = vpop.f32.mrf.mxu0
  %v1087 = vpop.f32.mrf.mxu0
  %v1088 = vadd.f32 0.0, %v1087
  %v1089 = vpop.f32.mrf.mxu0
  %1090 = vmatprep.mubr.bf16.mxu0 0
  %1091 = vmatmul.mubr.bf16.gmra.mxu0 %v900
  %v1092 = vpop.f32.mrf.mxu0
  %v1093 = vadd.f32 0.0, %v1092
  %v1094 = vpop.f32.mrf.mxu0
  %v1095 = vpop.f32.mrf.mxu0
  %v1096 = vadd.f32 0.0, %v1095
  %v1097 = vpop.f32.mrf.mxu0
  %1098 = vmatprep.mubr.bf16.mxu0 0
  %1099 = vmatmul.mubr.bf16.gmra.mxu0 %v902
  %v1100 = vpop.f32.mrf.mxu0
  %v1101 = vadd.f32 0.0, %v1100
  %v1102 = vpop.f32.mrf.mxu0
  %v1103 = vpop.f32.mrf.mxu0
  %v1104 = vadd.f32 0.0, %v1103
  %v1105 = vpop.f32.mrf.mxu0
  %1106 = vmatprep.mubr.bf16.mxu0 0
  %1107 = vmatmul.mubr.bf16.gmra.mxu0 %v904
  %v1108 = vpop.f32.mrf.mxu0
  %v1109 = vadd.f32 0.0, %v1108
  %v1110 = vpop.f32.mrf.mxu0
  %v1111 = vpop.f32.mrf.mxu0
  %v1112 = vadd.f32 0.0, %v1111
  %v1113 = vpop.f32.mrf.mxu0
  %1114 = vdwg.mxu0
  %1115 = vmatprep.subr.bf16.mxu0 0
  %1116 = vmatpush1.bf16.msra.mxu0 %v945
  %1117 = vmatprep.subr.bf16.mxu0 0
  %1118 = vmatpush1.bf16.msra.mxu0 %v944
  %1119 = vmatprep.subr.bf16.mxu0 0
  %1120 = vmatpush1.bf16.msra.mxu0 %v943
  %1121 = vmatprep.subr.bf16.mxu0 0
  %1122 = vmatpush1.bf16.msra.mxu0 %v942
  %1123 = vmatprep.subr.bf16.mxu0 0
  %1124 = vmatpush1.bf16.msra.mxu0 %v941
  %1125 = vmatprep.subr.bf16.mxu0 0
  %1126 = vmatpush1.bf16.msra.mxu0 %v940
  %1127 = vmatprep.subr.bf16.mxu0 0
  %1128 = vmatpush1.bf16.msra.mxu0 %v939
  %1129 = vmatprep.subr.bf16.mxu0 0
  %1130 = vmatpush1.bf16.msra.mxu0 %v938
  %1131 = vmatprep.subr.bf16.mxu0 0
  %1132 = vmatpush2.bf16.msra.mxu0 0
  %1133 = vmatprep.subr.bf16.mxu0 0
  %1134 = vmatpush2.bf16.msra.mxu0 0
  %1135 = vmatprep.subr.bf16.mxu0 0
  %1136 = vmatpush2.bf16.msra.mxu0 0
  %1137 = vmatprep.subr.bf16.mxu0 0
  %1138 = vmatpush2.bf16.msra.mxu0 0
  %1139 = vmatprep.subr.bf16.mxu0 0
  %1140 = vmatpush2.bf16.msra.mxu0 0
  %1141 = vmatprep.subr.bf16.mxu0 0
  %1142 = vmatpush2.bf16.msra.mxu0 0
  %1143 = vmatprep.subr.bf16.mxu0 0
  %1144 = vmatpush2.bf16.msra.mxu0 0
  %1145 = vmatprep.subr.bf16.mxu0 0
  %1146 = vmatpush2.bf16.msra.mxu0 0
  %1147 = vmatprep.mubr.bf16.mxu0 0
  %1148 = vmatmul.mubr.bf16.gmra.mxu0 %v875
  %v1149 = vpop.f32.mrf.mxu0
  %v1150 = vadd.f32 0.0, %v1149
  %v1151 = vpop.f32.mrf.mxu0
  %v1152 = vpop.f32.mrf.mxu0
  %v1153 = vadd.f32 0.0, %v1152
  %v1154 = vpop.f32.mrf.mxu0
  %1155 = vmatprep.mubr.bf16.mxu0 0
  %1156 = vmatmul.mubr.bf16.gmra.mxu0 %v877
  %v1157 = vpop.f32.mrf.mxu0
  %v1158 = vadd.f32 0.0, %v1157
  %v1159 = vpop.f32.mrf.mxu0
  %v1160 = vpop.f32.mrf.mxu0
  %v1161 = vadd.f32 0.0, %v1160
  %v1162 = vpop.f32.mrf.mxu0
  %1163 = vmatprep.mubr.bf16.mxu0 0
  %1164 = vmatmul.mubr.bf16.gmra.mxu0 %v879
  %v1165 = vpop.f32.mrf.mxu0
  %v1166 = vadd.f32 0.0, %v1165
  %v1167 = vpop.f32.mrf.mxu0
  %v1168 = vpop.f32.mrf.mxu0
  %v1169 = vadd.f32 0.0, %v1168
  %v1170 = vpop.f32.mrf.mxu0
  %1171 = vmatprep.mubr.bf16.mxu0 0
  %1172 = vmatmul.mubr.bf16.gmra.mxu0 %v881
  %v1173 = vpop.f32.mrf.mxu0
  %v1174 = vadd.f32 0.0, %v1173
  %v1175 = vpop.f32.mrf.mxu0
  %v1176 = vpop.f32.mrf.mxu0
  %v1177 = vadd.f32 0.0, %v1176
  %v1178 = vpop.f32.mrf.mxu0
  %1179 = vmatprep.mubr.bf16.mxu0 0
  %1180 = vmatmul.mubr.bf16.gmra.mxu0 %v883
  %v1181 = vpop.f32.mrf.mxu0
  %v1182 = vadd.f32 0.0, %v1181
  %v1183 = vpop.f32.mrf.mxu0
  %v1184 = vpop.f32.mrf.mxu0
  %v1185 = vadd.f32 0.0, %v1184
  %v1186 = vpop.f32.mrf.mxu0
  %1187 = vmatprep.mubr.bf16.mxu0 0
  %1188 = vmatmul.mubr.bf16.gmra.mxu0 %v885
  %v1189 = vpop.f32.mrf.mxu0
  %v1190 = vadd.f32 0.0, %v1189
  %v1191 = vpop.f32.mrf.mxu0
  %v1192 = vpop.f32.mrf.mxu0
  %v1193 = vadd.f32 0.0, %v1192
  %v1194 = vpop.f32.mrf.mxu0
  %1195 = vmatprep.mubr.bf16.mxu0 0
  %1196 = vmatmul.mubr.bf16.gmra.mxu0 %v887
  %v1197 = vpop.f32.mrf.mxu0
  %v1198 = vadd.f32 0.0, %v1197
  %v1199 = vpop.f32.mrf.mxu0
  %v1200 = vpop.f32.mrf.mxu0
  %v1201 = vadd.f32 0.0, %v1200
  %v1202 = vpop.f32.mrf.mxu0
  %1203 = vmatprep.mubr.bf16.mxu0 0
  %1204 = vmatmul.mubr.bf16.gmra.mxu0 %v889
  %v1205 = vpop.f32.mrf.mxu0
  %v1206 = vadd.f32 0.0, %v1205
  %v1207 = vpop.f32.mrf.mxu0
  %v1208 = vpop.f32.mrf.mxu0
  %v1209 = vadd.f32 0.0, %v1208
  %v1210 = vpop.f32.mrf.mxu0
  %1211 = vmatprep.mubr.bf16.mxu0 0
  %1212 = vmatmul.mubr.bf16.gmra.mxu0 %v891
  %v1213 = vpop.f32.mrf.mxu0
  %v1214 = vadd.f32 0.0, %v1213
  %v1215 = vpop.f32.mrf.mxu0
  %v1216 = vpop.f32.mrf.mxu0
  %v1217 = vadd.f32 0.0, %v1216
  %v1218 = vpop.f32.mrf.mxu0
  %1219 = vmatprep.mubr.bf16.mxu0 0
  %1220 = vmatmul.mubr.bf16.gmra.mxu0 %v893
  %v1221 = vpop.f32.mrf.mxu0
  %v1222 = vadd.f32 0.0, %v1221
  %v1223 = vpop.f32.mrf.mxu0
  %v1224 = vpop.f32.mrf.mxu0
  %v1225 = vadd.f32 0.0, %v1224
  %v1226 = vpop.f32.mrf.mxu0
  %1227 = vmatprep.mubr.bf16.mxu0 0
  %1228 = vmatmul.mubr.bf16.gmra.mxu0 %v895
  %v1229 = vpop.f32.mrf.mxu0
  %v1230 = vadd.f32 0.0, %v1229
  %v1231 = vpop.f32.mrf.mxu0
  %v1232 = vpop.f32.mrf.mxu0
  %v1233 = vadd.f32 0.0, %v1232
  %v1234 = vpop.f32.mrf.mxu0
  %1235 = vmatprep.mubr.bf16.mxu0 0
  %1236 = vmatmul.mubr.bf16.gmra.mxu0 %v897
  %v1237 = vpop.f32.mrf.mxu0
  %v1238 = vadd.f32 0.0, %v1237
  %v1239 = vpop.f32.mrf.mxu0
  %v1240 = vpop.f32.mrf.mxu0
  %v1241 = vadd.f32 0.0, %v1240
  %v1242 = vpop.f32.mrf.mxu0
  %1243 = vmatprep.mubr.bf16.mxu0 0
  %1244 = vmatmul.mubr.bf16.gmra.mxu0 %v899
  %v1245 = vpop.f32.mrf.mxu0
  %v1246 = vadd.f32 0.0, %v1245
  %v1247 = vpop.f32.mrf.mxu0
  %v1248 = vpop.f32.mrf.mxu0
  %v1249 = vadd.f32 0.0, %v1248
  %v1250 = vpop.f32.mrf.mxu0
  %1251 = vmatprep.mubr.bf16.mxu0 0
  %1252 = vmatmul.mubr.bf16.gmra.mxu0 %v901
  %v1253 = vpop.f32.mrf.mxu0
  %v1254 = vadd.f32 0.0, %v1253
  %v1255 = vpop.f32.mrf.mxu0
  %v1256 = vpop.f32.mrf.mxu0
  %v1257 = vadd.f32 0.0, %v1256
  %v1258 = vpop.f32.mrf.mxu0
  %1259 = vmatprep.mubr.bf16.mxu0 0
  %1260 = vmatmul.mubr.bf16.gmra.mxu0 %v903
  %v1261 = vpop.f32.mrf.mxu0
  %v1262 = vadd.f32 0.0, %v1261
  %v1263 = vpop.f32.mrf.mxu0
  %v1264 = vpop.f32.mrf.mxu0
  %v1265 = vadd.f32 0.0, %v1264
  %v1266 = vpop.f32.mrf.mxu0
  %1267 = vmatprep.mubr.bf16.mxu0 0
  %1268 = vmatmul.mubr.bf16.gmra.mxu0 %v905
  %v1269 = vpop.f32.mrf.mxu0
  %v1270 = vadd.f32 0.0, %v1269
  %v1271 = vpop.f32.mrf.mxu0
  %v1272 = vpop.f32.mrf.mxu0
  %v1273 = vadd.f32 0.0, %v1272
  %v1274 = vpop.f32.mrf.mxu0
  %1275 = vdwg.mxu0
  %v1276 = vpack.c.bf16 %v992, %v989
  %v1277 = vpack.c.bf16 %v1153, %v1150
  %v1278 = vpack.c.bf16 %v1000, %v997
  %v1279 = vpack.c.bf16 %v1161, %v1158
  %v1280 = vpack.c.bf16 %v1008, %v1005
  %v1281 = vpack.c.bf16 %v1169, %v1166
  %v1282 = vpack.c.bf16 %v1016, %v1013
  %v1283 = vpack.c.bf16 %v1177, %v1174
  %v1284 = vpack.c.bf16 %v1024, %v1021
  %v1285 = vpack.c.bf16 %v1185, %v1182
  %v1286 = vpack.c.bf16 %v1032, %v1029
  %v1287 = vpack.c.bf16 %v1193, %v1190
  %v1288 = vpack.c.bf16 %v1040, %v1037
  %v1289 = vpack.c.bf16 %v1201, %v1198
  %v1290 = vpack.c.bf16 %v1048, %v1045
  %v1291 = vpack.c.bf16 %v1209, %v1206
  %v1292 = vpack.c.bf16 %v1056, %v1053
  %v1293 = vpack.c.bf16 %v1217, %v1214
  %v1294 = vpack.c.bf16 %v1064, %v1061
  %v1295 = vpack.c.bf16 %v1225, %v1222
  %v1296 = vpack.c.bf16 %v1072, %v1069
  %v1297 = vpack.c.bf16 %v1233, %v1230
  %v1298 = vpack.c.bf16 %v1080, %v1077
  %v1299 = vpack.c.bf16 %v1241, %v1238
  %v1300 = vpack.c.bf16 %v1088, %v1085
  %v1301 = vpack.c.bf16 %v1249, %v1246
  %v1302 = vpack.c.bf16 %v1096, %v1093
  %v1303 = vpack.c.bf16 %v1257, %v1254
  %v1304 = vpack.c.bf16 %v1104, %v1101
  %v1305 = vpack.c.bf16 %v1265, %v1262
  %v1306 = vpack.c.bf16 %v1112, %v1109
  %v1307 = vpack.c.bf16 %v1273, %v1270
  %v1309 = vlaneseq
  %v1310 = vshrl.u32 %v1309, 7
  %v1311 = vsub.s32 0, %v1310
  %v1312 = vrot.slane %v113, %v1311
  %v1313 = vlaneseq
  %v1314 = vshrl.u32 %v1313, 7
  %v1315 = vsub.s32 1, %v1314
  %v1316 = vrot.slane %v113, %v1315
  %1319 = vmatprep.subr.bf16.mxu0 %v1291
  %1320 = vmatpush1.bf16.msra.mxu0 %v1290
  %1321 = vmatprep.subr.bf16.mxu0 %v1289
  %1322 = vmatpush1.bf16.msra.mxu0 %v1288
  %1323 = vmatprep.subr.bf16.mxu0 %v1287
  %1324 = vmatpush1.bf16.msra.mxu0 %v1286
  %1325 = vmatprep.subr.bf16.mxu0 %v1285
  %1326 = vmatpush1.bf16.msra.mxu0 %v1284
  %1327 = vmatprep.subr.bf16.mxu0 %v1283
  %1328 = vmatpush1.bf16.msra.mxu0 %v1282
  %1329 = vmatprep.subr.bf16.mxu0 %v1281
  %1330 = vmatpush1.bf16.msra.mxu0 %v1280
  %1331 = vmatprep.subr.bf16.mxu0 %v1279
  %1332 = vmatpush1.bf16.msra.mxu0 %v1278
  %1333 = vmatprep.subr.bf16.mxu0 %v1277
  %1334 = vmatpush1.bf16.msra.mxu0 %v1276
  %1335 = vmatprep.subr.bf16.mxu0 %v1307
  %1336 = vmatpush2.bf16.msra.mxu0 %v1306
  %1337 = vmatprep.subr.bf16.mxu0 %v1305
  %1338 = vmatpush2.bf16.msra.mxu0 %v1304
  %1339 = vmatprep.subr.bf16.mxu0 %v1303
  %1340 = vmatpush2.bf16.msra.mxu0 %v1302
  %1341 = vmatprep.subr.bf16.mxu0 %v1301
  %1342 = vmatpush2.bf16.msra.mxu0 %v1300
  %1343 = vmatprep.subr.bf16.mxu0 %v1299
  %1344 = vmatpush2.bf16.msra.mxu0 %v1298
  %1345 = vmatprep.subr.bf16.mxu0 %v1297
  %1346 = vmatpush2.bf16.msra.mxu0 %v1296
  %1347 = vmatprep.subr.bf16.mxu0 %v1295
  %1348 = vmatpush2.bf16.msra.mxu0 %v1294
  %1349 = vmatprep.subr.bf16.mxu0 %v1293
  %1350 = vmatpush2.bf16.msra.mxu0 %v1292
  %1351 = vmatprep.mubr.bf16.mxu0 %v211
  %1352 = vmatmul.mubr.bf16.gmra.mxu0 %v210
  %v1353 = vpop.f32.mrf.mxu0
  %v1354 = vadd.f32 %v1312, %v1353
  %v1355 = vpop.f32.mrf.mxu0
  %v1356 = vadd.f32 %v1316, %v1355
  %v1357 = vpop.f32.mrf.mxu0
  %v1358 = vadd.f32 %v1312, %v1357
  %v1359 = vpop.f32.mrf.mxu0
  %v1360 = vadd.f32 %v1316, %v1359
  %1361 = vmatprep.mubr.bf16.mxu0 %v213
  %1362 = vmatmul.mubr.bf16.gmra.mxu0 %v212
  %v1363 = vpop.f32.mrf.mxu0
  %v1364 = vadd.f32 %v1312, %v1363
  %v1365 = vpop.f32.mrf.mxu0
  %v1366 = vadd.f32 %v1316, %v1365
  %v1367 = vpop.f32.mrf.mxu0
  %v1368 = vadd.f32 %v1312, %v1367
  %v1369 = vpop.f32.mrf.mxu0
  %v1370 = vadd.f32 %v1316, %v1369
  %1371 = vmatprep.mubr.bf16.mxu0 %v215
  %1372 = vmatmul.mubr.bf16.gmra.mxu0 %v214
  %v1373 = vpop.f32.mrf.mxu0
  %v1374 = vadd.f32 %v1312, %v1373
  %v1375 = vpop.f32.mrf.mxu0
  %v1376 = vadd.f32 %v1316, %v1375
  %v1377 = vpop.f32.mrf.mxu0
  %v1378 = vadd.f32 %v1312, %v1377
  %v1379 = vpop.f32.mrf.mxu0
  %v1380 = vadd.f32 %v1316, %v1379
  %1381 = vmatprep.mubr.bf16.mxu0 %v217
  %1382 = vmatmul.mubr.bf16.gmra.mxu0 %v216
  %v1383 = vpop.f32.mrf.mxu0
  %v1384 = vadd.f32 %v1312, %v1383
  %v1385 = vpop.f32.mrf.mxu0
  %v1386 = vadd.f32 %v1316, %v1385
  %v1387 = vpop.f32.mrf.mxu0
  %v1388 = vadd.f32 %v1312, %v1387
  %v1389 = vpop.f32.mrf.mxu0
  %v1390 = vadd.f32 %v1316, %v1389
  %1391 = vmatprep.mubr.bf16.mxu0 %v219
  %1392 = vmatmul.mubr.bf16.gmra.mxu0 %v218
  %v1393 = vpop.f32.mrf.mxu0
  %v1394 = vadd.f32 %v1312, %v1393
  %v1395 = vpop.f32.mrf.mxu0
  %v1396 = vadd.f32 %v1316, %v1395
  %v1397 = vpop.f32.mrf.mxu0
  %v1398 = vadd.f32 %v1312, %v1397
  %v1399 = vpop.f32.mrf.mxu0
  %v1400 = vadd.f32 %v1316, %v1399
  %1401 = vmatprep.mubr.bf16.mxu0 %v221
  %1402 = vmatmul.mubr.bf16.gmra.mxu0 %v220
  %v1403 = vpop.f32.mrf.mxu0
  %v1404 = vadd.f32 %v1312, %v1403
  %v1405 = vpop.f32.mrf.mxu0
  %v1406 = vadd.f32 %v1316, %v1405
  %v1407 = vpop.f32.mrf.mxu0
  %v1408 = vadd.f32 %v1312, %v1407
  %v1409 = vpop.f32.mrf.mxu0
  %v1410 = vadd.f32 %v1316, %v1409
  %1411 = vmatprep.mubr.bf16.mxu0 %v223
  %1412 = vmatmul.mubr.bf16.gmra.mxu0 %v222
  %v1413 = vpop.f32.mrf.mxu0
  %v1414 = vadd.f32 %v1312, %v1413
  %v1415 = vpop.f32.mrf.mxu0
  %v1416 = vadd.f32 %v1316, %v1415
  %v1417 = vpop.f32.mrf.mxu0
  %v1418 = vadd.f32 %v1312, %v1417
  %v1419 = vpop.f32.mrf.mxu0
  %v1420 = vadd.f32 %v1316, %v1419
  %1421 = vmatprep.mubr.bf16.mxu0 %v225
  %1422 = vmatmul.mubr.bf16.gmra.mxu0 %v224
  %v1423 = vpop.f32.mrf.mxu0
  %v1424 = vadd.f32 %v1312, %v1423
  %v1425 = vpop.f32.mrf.mxu0
  %v1426 = vadd.f32 %v1316, %v1425
  %v1427 = vpop.f32.mrf.mxu0
  %v1428 = vadd.f32 %v1312, %v1427
  %v1429 = vpop.f32.mrf.mxu0
  %v1430 = vadd.f32 %v1316, %v1429
  %1431 = vmatprep.mubr.bf16.mxu0 %v227
  %1432 = vmatmul.mubr.bf16.gmra.mxu0 %v226
  %v1433 = vpop.f32.mrf.mxu0
  %v1434 = vadd.f32 %v1312, %v1433
  %v1435 = vpop.f32.mrf.mxu0
  %v1436 = vadd.f32 %v1316, %v1435
  %v1437 = vpop.f32.mrf.mxu0
  %v1438 = vadd.f32 %v1312, %v1437
  %v1439 = vpop.f32.mrf.mxu0
  %v1440 = vadd.f32 %v1316, %v1439
  %1441 = vmatprep.mubr.bf16.mxu0 %v229
  %1442 = vmatmul.mubr.bf16.gmra.mxu0 %v228
  %v1443 = vpop.f32.mrf.mxu0
  %v1444 = vadd.f32 %v1312, %v1443
  %v1445 = vpop.f32.mrf.mxu0
  %v1446 = vadd.f32 %v1316, %v1445
  %v1447 = vpop.f32.mrf.mxu0
  %v1448 = vadd.f32 %v1312, %v1447
  %v1449 = vpop.f32.mrf.mxu0
  %v1450 = vadd.f32 %v1316, %v1449
  %1451 = vmatprep.mubr.bf16.mxu0 %v231
  %1452 = vmatmul.mubr.bf16.gmra.mxu0 %v230
  %v1453 = vpop.f32.mrf.mxu0
  %v1454 = vadd.f32 %v1312, %v1453
  %v1455 = vpop.f32.mrf.mxu0
  %v1456 = vadd.f32 %v1316, %v1455
  %v1457 = vpop.f32.mrf.mxu0
  %v1458 = vadd.f32 %v1312, %v1457
  %v1459 = vpop.f32.mrf.mxu0
  %v1460 = vadd.f32 %v1316, %v1459
  %1461 = vmatprep.mubr.bf16.mxu0 %v233
  %1462 = vmatmul.mubr.bf16.gmra.mxu0 %v232
  %v1463 = vpop.f32.mrf.mxu0
  %v1464 = vadd.f32 %v1312, %v1463
  %v1465 = vpop.f32.mrf.mxu0
  %v1466 = vadd.f32 %v1316, %v1465
  %v1467 = vpop.f32.mrf.mxu0
  %v1468 = vadd.f32 %v1312, %v1467
  %v1469 = vpop.f32.mrf.mxu0
  %v1470 = vadd.f32 %v1316, %v1469
  %1471 = vmatprep.mubr.bf16.mxu0 %v235
  %1472 = vmatmul.mubr.bf16.gmra.mxu0 %v234
  %v1473 = vpop.f32.mrf.mxu0
  %v1474 = vadd.f32 %v1312, %v1473
  %v1475 = vpop.f32.mrf.mxu0
  %v1476 = vadd.f32 %v1316, %v1475
  %v1477 = vpop.f32.mrf.mxu0
  %v1478 = vadd.f32 %v1312, %v1477
  %v1479 = vpop.f32.mrf.mxu0
  %v1480 = vadd.f32 %v1316, %v1479
  %1481 = vmatprep.mubr.bf16.mxu0 %v237
  %1482 = vmatmul.mubr.bf16.gmra.mxu0 %v236
  %v1483 = vpop.f32.mrf.mxu0
  %v1484 = vadd.f32 %v1312, %v1483
  %v1485 = vpop.f32.mrf.mxu0
  %v1486 = vadd.f32 %v1316, %v1485
  %v1487 = vpop.f32.mrf.mxu0
  %v1488 = vadd.f32 %v1312, %v1487
  %v1489 = vpop.f32.mrf.mxu0
  %v1490 = vadd.f32 %v1316, %v1489
  %1491 = vmatprep.mubr.bf16.mxu0 %v239
  %1492 = vmatmul.mubr.bf16.gmra.mxu0 %v238
  %v1493 = vpop.f32.mrf.mxu0
  %v1494 = vadd.f32 %v1312, %v1493
  %v1495 = vpop.f32.mrf.mxu0
  %v1496 = vadd.f32 %v1316, %v1495
  %v1497 = vpop.f32.mrf.mxu0
  %v1498 = vadd.f32 %v1312, %v1497
  %v1499 = vpop.f32.mrf.mxu0
  %v1500 = vadd.f32 %v1316, %v1499
  %1501 = vmatprep.mubr.bf16.mxu0 %v241
  %1502 = vmatmul.mubr.bf16.gmra.mxu0 %v240
  %v1503 = vpop.f32.mrf.mxu0
  %v1504 = vadd.f32 %v1312, %v1503
  %v1505 = vpop.f32.mrf.mxu0
  %v1506 = vadd.f32 %v1316, %v1505
  %v1507 = vpop.f32.mrf.mxu0
  %v1508 = vadd.f32 %v1312, %v1507
  %v1509 = vpop.f32.mrf.mxu0
  %v1510 = vadd.f32 %v1316, %v1509
  %1511 = vdwg.mxu0
  %v1512 = vmax.f32 %v1354, 0.0
  %v1513 = vmax.f32 %v1356, 0.0
  %v1514 = vmax.f32 %v1358, 0.0
  %v1515 = vmax.f32 %v1360, 0.0
  %v1516 = vmax.f32 %v1364, 0.0
  %v1517 = vmax.f32 %v1366, 0.0
  %v1518 = vmax.f32 %v1368, 0.0
  %v1519 = vmax.f32 %v1370, 0.0
  %v1520 = vmax.f32 %v1374, 0.0
  %v1521 = vmax.f32 %v1376, 0.0
  %v1522 = vmax.f32 %v1378, 0.0
  %v1523 = vmax.f32 %v1380, 0.0
  %v1524 = vmax.f32 %v1384, 0.0
  %v1525 = vmax.f32 %v1386, 0.0
  %v1526 = vmax.f32 %v1388, 0.0
  %v1527 = vmax.f32 %v1390, 0.0
  %v1528 = vmax.f32 %v1394, 0.0
  %v1529 = vmax.f32 %v1396, 0.0
  %v1530 = vmax.f32 %v1398, 0.0
  %v1531 = vmax.f32 %v1400, 0.0
  %v1532 = vmax.f32 %v1404, 0.0
  %v1533 = vmax.f32 %v1406, 0.0
  %v1534 = vmax.f32 %v1408, 0.0
  %v1535 = vmax.f32 %v1410, 0.0
  %v1536 = vmax.f32 %v1414, 0.0
  %v1537 = vmax.f32 %v1416, 0.0
  %v1538 = vmax.f32 %v1418, 0.0
  %v1539 = vmax.f32 %v1420, 0.0
  %v1540 = vmax.f32 %v1424, 0.0
  %v1541 = vmax.f32 %v1426, 0.0
  %v1542 = vmax.f32 %v1428, 0.0
  %v1543 = vmax.f32 %v1430, 0.0
  %v1544 = vmax.f32 %v1434, 0.0
  %v1545 = vmax.f32 %v1436, 0.0
  %v1546 = vmax.f32 %v1438, 0.0
  %v1547 = vmax.f32 %v1440, 0.0
  %v1548 = vmax.f32 %v1444, 0.0
  %v1549 = vmax.f32 %v1446, 0.0
  %v1550 = vmax.f32 %v1448, 0.0
  %v1551 = vmax.f32 %v1450, 0.0
  %v1552 = vmax.f32 %v1454, 0.0
  %v1553 = vmax.f32 %v1456, 0.0
  %v1554 = vmax.f32 %v1458, 0.0
  %v1555 = vmax.f32 %v1460, 0.0
  %v1556 = vmax.f32 %v1464, 0.0
  %v1557 = vmax.f32 %v1466, 0.0
  %v1558 = vmax.f32 %v1468, 0.0
  %v1559 = vmax.f32 %v1470, 0.0
  %v1560 = vmax.f32 %v1474, 0.0
  %v1561 = vmax.f32 %v1476, 0.0
  %v1562 = vmax.f32 %v1478, 0.0
  %v1563 = vmax.f32 %v1480, 0.0
  %v1564 = vmax.f32 %v1484, 0.0
  %v1565 = vmax.f32 %v1486, 0.0
  %v1566 = vmax.f32 %v1488, 0.0
  %v1567 = vmax.f32 %v1490, 0.0
  %v1568 = vmax.f32 %v1494, 0.0
  %v1569 = vmax.f32 %v1496, 0.0
  %v1570 = vmax.f32 %v1498, 0.0
  %v1571 = vmax.f32 %v1500, 0.0
  %v1572 = vmax.f32 %v1504, 0.0
  %v1573 = vmax.f32 %v1506, 0.0
  %v1574 = vmax.f32 %v1508, 0.0
  %v1575 = vmax.f32 %v1510, 0.0
  %1576 = vst [vmem:[%s7] sm:$0xff] %v1512
  %1577 = vst [vmem:[%s7 + $0x8] sm:$0xff] %v1513
  %1578 = vst [vmem:[%s7 + $0x10] sm:$0xff] %v1514
  %1579 = vst [vmem:[%s7 + $0x18] sm:$0xff] %v1515
  %1580 = vst [vmem:[%s7 + $0x20] sm:$0xff] %v1516
  %1581 = vst [vmem:[%s7 + $0x28] sm:$0xff] %v1517
  %1582 = vst [vmem:[%s7 + $0x30] sm:$0xff] %v1518
  %1583 = vst [vmem:[%s7 + $0x38] sm:$0xff] %v1519
  %1584 = vst [vmem:[%s7 + $0x40] sm:$0xff] %v1520
  %1585 = vst [vmem:[%s7 + $0x48] sm:$0xff] %v1521
  %1586 = vst [vmem:[%s7 + $0x50] sm:$0xff] %v1522
  %1587 = vst [vmem:[%s7 + $0x58] sm:$0xff] %v1523
  %1588 = vst [vmem:[%s7 + $0x60] sm:$0xff] %v1524
  %1589 = vst [vmem:[%s7 + $0x68] sm:$0xff] %v1525
  %1590 = vst [vmem:[%s7 + $0x70] sm:$0xff] %v1526
  %1591 = vst [vmem:[%s7 + $0x78] sm:$0xff] %v1527
  %1592 = vst [vmem:[%s7 + $0x80] sm:$0xff] %v1528
  %1593 = vst [vmem:[%s7 + $0x88] sm:$0xff] %v1529
  %1594 = vst [vmem:[%s7 + $0x90] sm:$0xff] %v1530
  %1595 = vst [vmem:[%s7 + $0x98] sm:$0xff] %v1531
  %1596 = vst [vmem:[%s7 + $0xa0] sm:$0xff] %v1532
  %1597 = vst [vmem:[%s7 + $0xa8] sm:$0xff] %v1533
  %1598 = vst [vmem:[%s7 + $0xb0] sm:$0xff] %v1534
  %1599 = vst [vmem:[%s7 + $0xb8] sm:$0xff] %v1535
  %1600 = vst [vmem:[%s7 + $0xc0] sm:$0xff] %v1536
  %1601 = vst [vmem:[%s7 + $0xc8] sm:$0xff] %v1537
  %1602 = vst [vmem:[%s7 + $0xd0] sm:$0xff] %v1538
  %1603 = vst [vmem:[%s7 + $0xd8] sm:$0xff] %v1539
  %1604 = vst [vmem:[%s7 + $0xe0] sm:$0xff] %v1540
  %1605 = vst [vmem:[%s7 + $0xe8] sm:$0xff] %v1541
  %1606 = vst [vmem:[%s7 + $0xf0] sm:$0xff] %v1542
  %1607 = vst [vmem:[%s7 + $0xf8] sm:$0xff] %v1543
  %1608 = vst [vmem:[%s7 + $0x100] sm:$0xff] %v1544
  %1609 = vst [vmem:[%s7 + $0x108] sm:$0xff] %v1545
  %1610 = vst [vmem:[%s7 + $0x110] sm:$0xff] %v1546
  %1611 = vst [vmem:[%s7 + $0x118] sm:$0xff] %v1547
  %1612 = vst [vmem:[%s7 + $0x120] sm:$0xff] %v1548
  %1613 = vst [vmem:[%s7 + $0x128] sm:$0xff] %v1549
  %1614 = vst [vmem:[%s7 + $0x130] sm:$0xff] %v1550
  %1615 = vst [vmem:[%s7 + $0x138] sm:$0xff] %v1551
  %1616 = vst [vmem:[%s7 + $0x140] sm:$0xff] %v1552
  %1617 = vst [vmem:[%s7 + $0x148] sm:$0xff] %v1553
  %1618 = vst [vmem:[%s7 + $0x150] sm:$0xff] %v1554
  %1619 = vst [vmem:[%s7 + $0x158] sm:$0xff] %v1555
  %1620 = vst [vmem:[%s7 + $0x160] sm:$0xff] %v1556
  %1621 = vst [vmem:[%s7 + $0x168] sm:$0xff] %v1557
  %1622 = vst [vmem:[%s7 + $0x170] sm:$0xff] %v1558
  %1623 = vst [vmem:[%s7 + $0x178] sm:$0xff] %v1559
  %1624 = vst [vmem:[%s7 + $0x180] sm:$0xff] %v1560
  %1625 = vst [vmem:[%s7 + $0x188] sm:$0xff] %v1561
  %1626 = vst [vmem:[%s7 + $0x190] sm:$0xff] %v1562
  %1627 = vst [vmem:[%s7 + $0x198] sm:$0xff] %v1563
  %1628 = vst [vmem:[%s7 + $0x1a0] sm:$0xff] %v1564
  %1629 = vst [vmem:[%s7 + $0x1a8] sm:$0xff] %v1565
  %1630 = vst [vmem:[%s7 + $0x1b0] sm:$0xff] %v1566
  %1631 = vst [vmem:[%s7 + $0x1b8] sm:$0xff] %v1567
  %1632 = vst [vmem:[%s7 + $0x1c0] sm:$0xff] %v1568
  %1633 = vst [vmem:[%s7 + $0x1c8] sm:$0xff] %v1569
  %1634 = vst [vmem:[%s7 + $0x1d0] sm:$0xff] %v1570
  %1635 = vst [vmem:[%s7 + $0x1d8] sm:$0xff] %v1571
  %1636 = vst [vmem:[%s7 + $0x1e0] sm:$0xff] %v1572
  %1637 = vst [vmem:[%s7 + $0x1e8] sm:$0xff] %v1573
  %1638 = vst [vmem:[%s7 + $0x1f0] sm:$0xff] %v1574
  %1639 = vst [vmem:[%s7 + $0x1f8] sm:$0xff] %v1575
  %v1640 = vpack.c.bf16 %v1514, %v1512
  %v1641 = vpack.c.bf16 %v1515, %v1513
  %v1642 = vpack.c.bf16 %v1518, %v1516
  %v1643 = vpack.c.bf16 %v1519, %v1517
  %v1644 = vpack.c.bf16 %v1522, %v1520
  %v1645 = vpack.c.bf16 %v1523, %v1521
  %v1646 = vpack.c.bf16 %v1526, %v1524
  %v1647 = vpack.c.bf16 %v1527, %v1525
  %v1648 = vpack.c.bf16 %v1530, %v1528
  %v1649 = vpack.c.bf16 %v1531, %v1529
  %v1650 = vpack.c.bf16 %v1534, %v1532
  %v1651 = vpack.c.bf16 %v1535, %v1533
  %v1652 = vpack.c.bf16 %v1538, %v1536
  %v1653 = vpack.c.bf16 %v1539, %v1537
  %v1654 = vpack.c.bf16 %v1542, %v1540
  %v1655 = vpack.c.bf16 %v1543, %v1541
  %v1656 = vpack.c.bf16 %v1546, %v1544
  %v1657 = vpack.c.bf16 %v1547, %v1545
  %v1658 = vpack.c.bf16 %v1550, %v1548
  %v1659 = vpack.c.bf16 %v1551, %v1549
  %v1660 = vpack.c.bf16 %v1554, %v1552
  %v1661 = vpack.c.bf16 %v1555, %v1553
  %v1662 = vpack.c.bf16 %v1558, %v1556
  %v1663 = vpack.c.bf16 %v1559, %v1557
  %v1664 = vpack.c.bf16 %v1562, %v1560
  %v1665 = vpack.c.bf16 %v1563, %v1561
  %v1666 = vpack.c.bf16 %v1566, %v1564
  %v1667 = vpack.c.bf16 %v1567, %v1565
  %v1668 = vpack.c.bf16 %v1570, %v1568
  %v1669 = vpack.c.bf16 %v1571, %v1569
  %v1670 = vpack.c.bf16 %v1574, %v1572
  %v1671 = vpack.c.bf16 %v1575, %v1573
  %v1673 = vunpack.c.l.b16 %v93
  %v1674 = vunpack.c.h.b16 %v93
  %v1675 = vpack.c.b16 %v1673, %v1673
  %v1676 = vpack.c.b16 %v1674, %v1674
  %1679 = vmatprep.subr.bf16.mxu0 %v1655
  %1680 = vmatpush1.bf16.msra.mxu0 %v1654
  %1681 = vmatprep.subr.bf16.mxu0 %v1653
  %1682 = vmatpush1.bf16.msra.mxu0 %v1652
  %1683 = vmatprep.subr.bf16.mxu0 %v1651
  %1684 = vmatpush1.bf16.msra.mxu0 %v1650
  %1685 = vmatprep.subr.bf16.mxu0 %v1649
  %1686 = vmatpush1.bf16.msra.mxu0 %v1648
  %1687 = vmatprep.subr.bf16.mxu0 %v1647
  %1688 = vmatpush1.bf16.msra.mxu0 %v1646
  %1689 = vmatprep.subr.bf16.mxu0 %v1645
  %1690 = vmatpush1.bf16.msra.mxu0 %v1644
  %1691 = vmatprep.subr.bf16.mxu0 %v1643
  %1692 = vmatpush1.bf16.msra.mxu0 %v1642
  %1693 = vmatprep.subr.bf16.mxu0 %v1641
  %1694 = vmatpush1.bf16.msra.mxu0 %v1640
  %1695 = vmatprep.subr.bf16.mxu0 %v1671
  %1696 = vmatpush2.bf16.msra.mxu0 %v1670
  %1697 = vmatprep.subr.bf16.mxu0 %v1669
  %1698 = vmatpush2.bf16.msra.mxu0 %v1668
  %1699 = vmatprep.subr.bf16.mxu0 %v1667
  %1700 = vmatpush2.bf16.msra.mxu0 %v1666
  %1701 = vmatprep.subr.bf16.mxu0 %v1665
  %1702 = vmatpush2.bf16.msra.mxu0 %v1664
  %1703 = vmatprep.subr.bf16.mxu0 %v1663
  %1704 = vmatpush2.bf16.msra.mxu0 %v1662
  %1705 = vmatprep.subr.bf16.mxu0 %v1661
  %1706 = vmatpush2.bf16.msra.mxu0 %v1660
  %1707 = vmatprep.subr.bf16.mxu0 %v1659
  %1708 = vmatpush2.bf16.msra.mxu0 %v1658
  %1709 = vmatprep.subr.bf16.mxu0 %v1657
  %1710 = vmatpush2.bf16.msra.mxu0 %v1656
  %1711 = vmatprep.mubr.bf16.mxu0 %v1676
  %1712 = vmatmul.mubr.bf16.gmra.mxu0 %v1675
  %v1713 = vpop.f32.mrf.mxu0
  %v1714 = vadd.f32 0.0, %v1713
  %v1715 = vpop.f32.mrf.mxu0
  %v1716 = vadd.f32 0.0, %v1715
  %v1717 = vpop.f32.mrf.mxu0
  %v1718 = vpop.f32.mrf.mxu0
  %1719 = vdwg.mxu0
  %1720 = vst [vmem:[%s8] sm:$0xff] %v1714
  %1721 = vst [vmem:[%s8 + $0x8] sm:$0xff] %v1716
  // Predicated region
  $region30: #{_lambda_.1} parent=0 // pred_check
    _
  $region31: #{_lambda_.1} parent=0 // pred_check_branch
    %1723 = sbr.rel (0) target = $region33
  $region32: #{_lambda_.1} parent=0 // pred_region
    _
  $region33: #{_lambda_.1} parent=0 // pred_fallthru
    _
  // Predicated region
  $region34: #{_lambda_.1} parent=0 // pred_check
    _
  $region35: #{_lambda_.1} parent=0 // pred_check_branch
    %1725 = sbr.rel (0) target = $region37
  $region36: #{_lambda_.1} parent=0 // pred_region
    _
  $region37: #{_lambda_.1} parent=0 // pred_fallthru
    _
  // Predicated region
  $region38: #{_lambda_.1} parent=0 // pred_check
    _
  $region39: #{_lambda_.1} parent=0 // pred_check_branch
    %1727 = sbr.rel (0) target = $region41
  $region40: #{_lambda_.1} parent=0 // pred_region
    _
  $region41: #{_lambda_.1} parent=0 // pred_fallthru
    _
  // Predicated region
  $region42: #{_lambda_.1} parent=0 // pred_check
    _
  $region43: #{_lambda_.1} parent=0 // pred_check_branch
    %1729 = sbr.rel (0) target = $region45
  $region44: #{_lambda_.1} parent=0 // pred_region
    _
  $region45: #{_lambda_.1} parent=0 // pred_fallthru
    _

</llo_original>
